<compile_context>
chip_gen: v7x
topology: tpu7x:2x2x1
jax: 0.10.0
libtpu: 0.0.40
codegen_flags: <defaults>
</compile_context>

<pallas_src>
import functools

import jax
import jax.numpy as jnp
import numpy as np
from jax import lax
from jax.experimental import pallas as pl
from jax.experimental.pallas import tpu as pltpu

BN_EPS = 1e-5


def _convb_kernel(xcol_ref, pk_ref, mask_ref, o_ref, yext_ref, *,
                  c_out, ppad, base, pe2, inv_n, tap_starts,
                  w1_cols, w2_col0, bn_col0):
    # xcol_ref: (9*C_in, Ppad)  conv1 im2col (built in the wrapper), lane-dense
    # pk_ref  : (C_out, 128)    packed params: [w1 | w2 | g1 b1 g2 b2 | 0]
    # mask_ref: (1, Ppad)       1.0 at flat positions that are real output pixels
    # o_ref   : (C_out, Ppad)
    # yext_ref: (C_out, pe2)    conv2 staging scratch with 128-lane halos
    maskb = jnp.broadcast_to(mask_ref[...], (c_out, ppad))   # hoisted once, reused 4x

    g1 = pk_ref[:, bn_col0 + 0:bn_col0 + 1]
    b1 = pk_ref[:, bn_col0 + 1:bn_col0 + 2]
    g2 = pk_ref[:, bn_col0 + 2:bn_col0 + 3]
    b2 = pk_ref[:, bn_col0 + 3:bn_col0 + 4]

    # ---- conv1: single im2col matmul ----
    y = jnp.dot(pk_ref[:, 0:w1_cols], xcol_ref[...],
                preferred_element_type=jnp.float32)          # (C_out, Ppad)

    # ---- BN1 (training-mode batch stats over valid pixels, fused single pass) + ReLU ----
    ym = y * maskb
    mean = jnp.sum(ym, axis=1, keepdims=True) * inv_n
    ex2 = jnp.sum(ym * y, axis=1, keepdims=True) * inv_n
    var = ex2 - mean * mean                                  # biased, matches torch training
    y = (y - mean) * lax.rsqrt(var + BN_EPS) * g1 + b1
    y = jnp.maximum(y, 0.0) * maskb                          # zero halo/garbage lanes

    # ---- stage conv2's zero-padded input: 128-aligned store, zero only the halos ----
    yext_ref[:, 0:base] = jnp.zeros((c_out, base), jnp.float32)
    yext_ref[:, base + ppad:pe2] = jnp.zeros((c_out, pe2 - base - ppad), jnp.float32)
    yext_ref[:, base:base + ppad] = y

    # ---- conv2: 9 accumulated small matmuls straight off the staging buffer ----
    z = None
    for t, start in enumerate(tap_starts):
        wt = pk_ref[:, w2_col0 + t * c_out:w2_col0 + (t + 1) * c_out]    # (C_out, C_out)
        d = jnp.dot(wt, yext_ref[:, start:start + ppad],
                    preferred_element_type=jnp.float32)
        z = d if z is None else z + d

    # ---- BN2 + ReLU ----
    zm = z * maskb
    mean2 = jnp.sum(zm, axis=1, keepdims=True) * inv_n
    ex2_2 = jnp.sum(zm * z, axis=1, keepdims=True) * inv_n
    var2 = ex2_2 - mean2 * mean2
    z = (z - mean2) * lax.rsqrt(var2 + BN_EPS) * g2 + b2
    o_ref[...] = jnp.maximum(z, 0.0)     # garbage lanes are cropped by the wrapper


def convb_forward(x_nchw, params):
    w1, b1, g1, be1, w2, b2, g2, be2 = params       # torch layouts: w = (C_out, C_in, 3, 3)
    del b1, b2   # cancelled exactly by training-mode BN mean subtraction
    N, C_in, H, W = x_nchw.shape
    C_out = w1.shape[0]
    Hp, Wp = H + 2, W + 2
    P = N * Hp * Wp                                   # valid flat (window-corner) positions
    LANE = 128
    Ppad = ((P + LANE - 1) // LANE) * LANE            # lane-dense padded flat axis
    offsets = tuple(dh * Wp + dw for dh in range(3) for dw in range(3))

    BASE = LANE                                       # 128-aligned conv2 staging offset
    assert BASE >= Wp + 1, "leading halo must cover the conv2 window reach"
    tap_starts = tuple(BASE + off - (Wp + 1) for off in offsets)
    pe2 = BASE + Ppad + LANE                          # trailing halo >= Wp+1, lane-aligned

    # ---- layout plumbing done once here (XLA), never inside the kernel ----
    xpad = jnp.pad(x_nchw, ((0, 0), (0, 0), (1, 1), (1, 1))).astype(jnp.float32)
    xflat = xpad.transpose(1, 0, 2, 3).reshape(C_in, P)                       # channel-major
    xext = jnp.pad(xflat, ((0, 0), (0, 2 * Wp + 2)))
    xcol = jnp.concatenate([xext[:, off:off + P] for off in offsets], axis=0)  # (9*C_in, P)
    xcol = jnp.pad(xcol, ((0, 0), (0, Ppad - P)))                              # (9*C_in, Ppad)

    # packed parameter block: [ w1 (9*C_in) | w2 (9*C_out) | g1 b1 g2 b2 | zeros ]
    w1f = w1.transpose(0, 2, 3, 1).reshape(C_out, 9 * C_in).astype(jnp.float32)
    w2f = w2.transpose(0, 2, 3, 1).reshape(C_out, 9 * C_out).astype(jnp.float32)
    bn = jnp.stack([g1, be1, g2, be2], axis=1).astype(jnp.float32)             # (C_out, 4)
    w1_cols = 9 * C_in
    w2_col0 = w1_cols
    bn_col0 = w2_col0 + 9 * C_out
    pk_cols = max(LANE, ((bn_col0 + 4 + LANE - 1) // LANE) * LANE)
    pk = jnp.concatenate(
        [w1f, w2f, bn, jnp.zeros((C_out, pk_cols - (bn_col0 + 4)), jnp.float32)], axis=1)

    # 1.0 at flat positions that are real output pixels (window-corner coordinates)
    m = np.zeros((N, Hp, Wp), np.float32)
    m[:, :H, :W] = 1.0
    mask = jnp.asarray(np.pad(m.reshape(1, P), ((0, 0), (0, Ppad - P))))

    kernel = functools.partial(
        _convb_kernel, c_out=C_out, ppad=Ppad, base=BASE, pe2=pe2,
        inv_n=1.0 / float(N * H * W), tap_starts=tap_starts,
        w1_cols=w1_cols, w2_col0=w2_col0, bn_col0=bn_col0)

    out = pl.pallas_call(
        kernel,
        out_shape=jax.ShapeDtypeStruct((C_out, Ppad), jnp.float32),
        grid_spec=pltpu.PrefetchScalarGridSpec(
            num_scalar_prefetch=0,
            grid=(1,),
            in_specs=[
                pl.BlockSpec((9 * C_in, Ppad), lambda i: (0, 0)),
                pl.BlockSpec((C_out, pk_cols), lambda i: (0, 0)),
                pl.BlockSpec((1, Ppad), lambda i: (0, 0)),
            ],
            out_specs=pl.BlockSpec((C_out, Ppad), lambda i: (0, 0)),
            scratch_shapes=[pltpu.VMEM((C_out, pe2), jnp.float32)],
        ),
        compiler_params=pltpu.CompilerParams(dimension_semantics=("arbitrary",)),
    )(xcol, pk, mask)

    # (C_out, Ppad) -> NCHW: valid pixels live at [:H, :W] of each padded frame
    return out[:, :P].reshape(C_out, N, Hp, Wp)[:, :, :H, :W].transpose(1, 0, 2, 3)


def _bn_relu(x, g, b):
    mean = jnp.mean(x, axis=(0, 2, 3), keepdims=True)
    var = jnp.mean(jnp.square(x - mean), axis=(0, 2, 3), keepdims=True)
    return jnp.maximum((x - mean) * lax.rsqrt(var + BN_EPS)
                       * g[None, :, None, None] + b[None, :, None, None], 0.0)


def reference(x, params):
    """Pure-JAX reference mirroring the PyTorch ConvB forward (training-mode BN)."""
    w1, b1, g1, be1, w2, b2, g2, be2 = params
    dn = ('NCHW', 'OIHW', 'NCHW')
    y = lax.conv_general_dilated(x, w1, (1, 1), 'SAME', dimension_numbers=dn,
                                 precision=lax.Precision.HIGHEST) + b1[None, :, None, None]
    y = _bn_relu(y, g1, be1)
    z = lax.conv_general_dilated(y, w2, (1, 1), 'SAME', dimension_numbers=dn,
                                 precision=lax.Precision.HIGHEST) + b2[None, :, None, None]
    return _bn_relu(z, g2, be2)


if __name__ == "__main__":
    key = jax.random.PRNGKey(0)
    N, C_in, C_out, H, W = 2, 4, 8, 16, 16

    ks = jax.random.split(key, 9)
    x = jax.random.normal(ks[0], (N, C_in, H, W), jnp.float32)
    w1 = 0.3 * jax.random.normal(ks[1], (C_out, C_in, 3, 3), jnp.float32)
    b1 = 0.1 * jax.random.normal(ks[2], (C_out,), jnp.float32)
    g1 = 1.0 + 0.1 * jax.random.normal(ks[3], (C_out,), jnp.float32)
    be1 = 0.1 * jax.random.normal(ks[4], (C_out,), jnp.float32)
    w2 = 0.2 * jax.random.normal(ks[5], (C_out, C_out, 3, 3), jnp.float32)
    b2 = 0.1 * jax.random.normal(ks[6], (C_out,), jnp.float32)
    g2 = 1.0 + 0.1 * jax.random.normal(ks[7], (C_out,), jnp.float32)
    be2 = 0.1 * jax.random.normal(ks[8], (C_out,), jnp.float32)
    params = (w1, b1, g1, be1, w2, b2, g2, be2)

    out = jax.block_until_ready(jax.jit(convb_forward)(x, params))
    ref = jax.block_until_ready(reference(x, params))

    assert out.shape == (N, C_out, H, W)
    np.testing.assert_allclose(np.asarray(out), np.asarray(ref), rtol=1e-4, atol=1e-4)
    print("KERNEL_OK")
</pallas_src>

<mosaic_0001>
module attributes {stable_mosaic.version = 11 : i64} {
  func.func @_convb_kernel(%arg0: i32, %arg1: memref<36x768xf32, #tpu.memory_space<vmem>>, %arg2: memref<8x128xf32, #tpu.memory_space<vmem>>, %arg3: memref<1x768xf32, #tpu.memory_space<vmem>>, %arg4: memref<8x768xf32, #tpu.memory_space<vmem>>, %arg5: memref<8x1024xf32, #tpu.memory_space<vmem>>) attributes {dimension_semantics = [#tpu.dimension_semantics<arbitrary>], iteration_bounds = array<i64: 1>, scalar_prefetch = 0 : i64, scratch_operands = 1 : i64, tpu.core_type = #tpu.core_type<tc>, window_params = [{pipeline_mode = #tpu.pipeline_mode<synchronous>, transform_indices = @transform_0, window_bounds = array<i64: 36, 768>}, {pipeline_mode = #tpu.pipeline_mode<synchronous>, transform_indices = @transform_1, window_bounds = array<i64: 8, 128>}, {pipeline_mode = #tpu.pipeline_mode<synchronous>, transform_indices = @transform_2, window_bounds = array<i64: 1, 768>}, {pipeline_mode = #tpu.pipeline_mode<synchronous>, transform_indices = @transform_3, window_bounds = array<i64: 8, 768>}]} {
    %c0 = arith.constant 0 : index
    %c0_0 = arith.constant 0 : index
    %0 = vector.load %arg3[%c0, %c0_0] : memref<1x768xf32, #tpu.memory_space<vmem>>, vector<1x768xf32>
    %1 = vector.shape_cast %0 : vector<1x768xf32> to vector<1x768xf32>
    %2 = vector.broadcast %1 : vector<1x768xf32> to vector<8x768xf32>
    %c0_1 = arith.constant 0 : index
    %c108 = arith.constant 108 : index
    %3 = vector.load %arg2[%c0_1, %c108] : memref<8x128xf32, #tpu.memory_space<vmem>>, vector<8x1xf32>
    %c0_2 = arith.constant 0 : index
    %c109 = arith.constant 109 : index
    %4 = vector.load %arg2[%c0_2, %c109] : memref<8x128xf32, #tpu.memory_space<vmem>>, vector<8x1xf32>
    %c0_3 = arith.constant 0 : index
    %c110 = arith.constant 110 : index
    %5 = vector.load %arg2[%c0_3, %c110] : memref<8x128xf32, #tpu.memory_space<vmem>>, vector<8x1xf32>
    %c0_4 = arith.constant 0 : index
    %c111 = arith.constant 111 : index
    %6 = vector.load %arg2[%c0_4, %c111] : memref<8x128xf32, #tpu.memory_space<vmem>>, vector<8x1xf32>
    %c0_5 = arith.constant 0 : index
    %c0_6 = arith.constant 0 : index
    %7 = vector.load %arg2[%c0_5, %c0_6] : memref<8x128xf32, #tpu.memory_space<vmem>>, vector<8x36xf32>
    %c0_7 = arith.constant 0 : index
    %c0_8 = arith.constant 0 : index
    %8 = vector.load %arg1[%c0_7, %c0_8] : memref<36x768xf32, #tpu.memory_space<vmem>>, vector<36x768xf32>
    %cst = arith.constant dense<0.000000e+00> : vector<8x768xf32>
    %9 = tpu.matmul %7, %8, %cst {dimension_numbers = #tpu.dot_dimension_numbers<[1], [0], [0], [1], [0, 0, 1, 1], [], []>} : vector<8x36xf32>, vector<36x768xf32>, vector<8x768xf32> -> vector<8x768xf32>
    %10 = arith.mulf %9, %2 : vector<8x768xf32>
    %cst_9 = arith.constant dense<0.000000e+00> : vector<8xf32>
    %11 = vector.multi_reduction <add>, %10, %cst_9 [1] : vector<8x768xf32> to vector<8xf32>
    %12 = vector.shape_cast %11 : vector<8xf32> to vector<8x1xf32>
    %cst_10 = arith.constant 0.001953125 : f32
    %13 = vector.broadcast %cst_10 : f32 to vector<8x1xf32>
    %14 = arith.mulf %12, %13 : vector<8x1xf32>
    %15 = arith.mulf %10, %9 : vector<8x768xf32>
    %cst_11 = arith.constant dense<0.000000e+00> : vector<8xf32>
    %16 = vector.multi_reduction <add>, %15, %cst_11 [1] : vector<8x768xf32> to vector<8xf32>
    %17 = vector.shape_cast %16 : vector<8xf32> to vector<8x1xf32>
    %cst_12 = arith.constant 0.001953125 : f32
    %18 = vector.broadcast %cst_12 : f32 to vector<8x1xf32>
    %19 = arith.mulf %17, %18 : vector<8x1xf32>
    %20 = arith.mulf %14, %14 : vector<8x1xf32>
    %21 = arith.subf %19, %20 : vector<8x1xf32>
    %22 = vector.broadcast %14 : vector<8x1xf32> to vector<8x768xf32>
    %23 = arith.subf %9, %22 : vector<8x768xf32>
    %cst_13 = arith.constant 9.99999974E-6 : f32
    %24 = vector.broadcast %cst_13 : f32 to vector<8x1xf32>
    %25 = arith.addf %21, %24 : vector<8x1xf32>
    %26 = math.rsqrt %25 : vector<8x1xf32>
    %27 = vector.broadcast %26 : vector<8x1xf32> to vector<8x768xf32>
    %28 = arith.mulf %23, %27 : vector<8x768xf32>
    %29 = vector.broadcast %3 : vector<8x1xf32> to vector<8x768xf32>
    %30 = arith.mulf %28, %29 : vector<8x768xf32>
    %31 = vector.broadcast %4 : vector<8x1xf32> to vector<8x768xf32>
    %32 = arith.addf %30, %31 : vector<8x768xf32>
    %cst_14 = arith.constant 0.000000e+00 : f32
    %33 = vector.broadcast %cst_14 : f32 to vector<8x768xf32>
    %34 = arith.maximumf %32, %33 : vector<8x768xf32>
    %35 = arith.mulf %34, %2 : vector<8x768xf32>
    %cst_15 = arith.constant 0.000000e+00 : f32
    %36 = vector.broadcast %cst_15 : f32 to vector<8x128xf32>
    %c0_16 = arith.constant 0 : index
    %c0_17 = arith.constant 0 : index
    %37 = vector.load %arg5[%c0_16, %c0_17] : memref<8x1024xf32, #tpu.memory_space<vmem>>, vector<8x128xf32>
    tpu.vector_store %arg5[%c0_16, %c0_17], %36 {strides = array<i32>} : memref<8x1024xf32, #tpu.memory_space<vmem>>, vector<8x128xf32>,
    %cst_18 = arith.constant 0.000000e+00 : f32
    %38 = vector.broadcast %cst_18 : f32 to vector<8x128xf32>
    %c0_19 = arith.constant 0 : index
    %c896 = arith.constant 896 : index
    %39 = vector.load %arg5[%c0_19, %c896] : memref<8x1024xf32, #tpu.memory_space<vmem>>, vector<8x128xf32>
    tpu.vector_store %arg5[%c0_19, %c896], %38 {strides = array<i32>} : memref<8x1024xf32, #tpu.memory_space<vmem>>, vector<8x128xf32>,
    %c0_20 = arith.constant 0 : index
    %c128 = arith.constant 128 : index
    %40 = vector.load %arg5[%c0_20, %c128] : memref<8x1024xf32, #tpu.memory_space<vmem>>, vector<8x768xf32>
    tpu.vector_store %arg5[%c0_20, %c128], %35 {strides = array<i32>} : memref<8x1024xf32, #tpu.memory_space<vmem>>, vector<8x768xf32>,
    %c0_21 = arith.constant 0 : index
    %c36 = arith.constant 36 : index
    %41 = vector.load %arg2[%c0_21, %c36] : memref<8x128xf32, #tpu.memory_space<vmem>>, vector<8x8xf32>
    %c0_22 = arith.constant 0 : index
    %c109_23 = arith.constant 109 : index
    %42 = vector.load %arg5[%c0_22, %c109_23] : memref<8x1024xf32, #tpu.memory_space<vmem>>, vector<8x768xf32>
    %cst_24 = arith.constant dense<0.000000e+00> : vector<8x768xf32>
    %43 = tpu.matmul %41, %42, %cst_24 {dimension_numbers = #tpu.dot_dimension_numbers<[1], [0], [0], [1], [0, 0, 1, 1], [], []>} : vector<8x8xf32>, vector<8x768xf32>, vector<8x768xf32> -> vector<8x768xf32>
    %c0_25 = arith.constant 0 : index
    %c44 = arith.constant 44 : index
    %44 = vector.load %arg2[%c0_25, %c44] : memref<8x128xf32, #tpu.memory_space<vmem>>, vector<8x8xf32>
    %c0_26 = arith.constant 0 : index
    %c110_27 = arith.constant 110 : index
    %45 = vector.load %arg5[%c0_26, %c110_27] : memref<8x1024xf32, #tpu.memory_space<vmem>>, vector<8x768xf32>
    %cst_28 = arith.constant dense<0.000000e+00> : vector<8x768xf32>
    %46 = tpu.matmul %44, %45, %cst_28 {dimension_numbers = #tpu.dot_dimension_numbers<[1], [0], [0], [1], [0, 0, 1, 1], [], []>} : vector<8x8xf32>, vector<8x768xf32>, vector<8x768xf32> -> vector<8x768xf32>
    %47 = arith.addf %43, %46 : vector<8x768xf32>
    %c0_29 = arith.constant 0 : index
    %c52 = arith.constant 52 : index
    %48 = vector.load %arg2[%c0_29, %c52] : memref<8x128xf32, #tpu.memory_space<vmem>>, vector<8x8xf32>
    %c0_30 = arith.constant 0 : index
    %c111_31 = arith.constant 111 : index
    %49 = vector.load %arg5[%c0_30, %c111_31] : memref<8x1024xf32, #tpu.memory_space<vmem>>, vector<8x768xf32>
    %cst_32 = arith.constant dense<0.000000e+00> : vector<8x768xf32>
    %50 = tpu.matmul %48, %49, %cst_32 {dimension_numbers = #tpu.dot_dimension_numbers<[1], [0], [0], [1], [0, 0, 1, 1], [], []>} : vector<8x8xf32>, vector<8x768xf32>, vector<8x768xf32> -> vector<8x768xf32>
    %51 = arith.addf %47, %50 : vector<8x768xf32>
    %c0_33 = arith.constant 0 : index
    %c60 = arith.constant 60 : index
    %52 = vector.load %arg2[%c0_33, %c60] : memref<8x128xf32, #tpu.memory_space<vmem>>, vector<8x8xf32>
    %c0_34 = arith.constant 0 : index
    %c127 = arith.constant 127 : index
    %53 = vector.load %arg5[%c0_34, %c127] : memref<8x1024xf32, #tpu.memory_space<vmem>>, vector<8x768xf32>
    %cst_35 = arith.constant dense<0.000000e+00> : vector<8x768xf32>
    %54 = tpu.matmul %52, %53, %cst_35 {dimension_numbers = #tpu.dot_dimension_numbers<[1], [0], [0], [1], [0, 0, 1, 1], [], []>} : vector<8x8xf32>, vector<8x768xf32>, vector<8x768xf32> -> vector<8x768xf32>
    %55 = arith.addf %51, %54 : vector<8x768xf32>
    %c0_36 = arith.constant 0 : index
    %c68 = arith.constant 68 : index
    %56 = vector.load %arg2[%c0_36, %c68] : memref<8x128xf32, #tpu.memory_space<vmem>>, vector<8x8xf32>
    %c0_37 = arith.constant 0 : index
    %c128_38 = arith.constant 128 : index
    %57 = vector.load %arg5[%c0_37, %c128_38] : memref<8x1024xf32, #tpu.memory_space<vmem>>, vector<8x768xf32>
    %cst_39 = arith.constant dense<0.000000e+00> : vector<8x768xf32>
    %58 = tpu.matmul %56, %57, %cst_39 {dimension_numbers = #tpu.dot_dimension_numbers<[1], [0], [0], [1], [0, 0, 1, 1], [], []>} : vector<8x8xf32>, vector<8x768xf32>, vector<8x768xf32> -> vector<8x768xf32>
    %59 = arith.addf %55, %58 : vector<8x768xf32>
    %c0_40 = arith.constant 0 : index
    %c76 = arith.constant 76 : index
    %60 = vector.load %arg2[%c0_40, %c76] : memref<8x128xf32, #tpu.memory_space<vmem>>, vector<8x8xf32>
    %c0_41 = arith.constant 0 : index
    %c129 = arith.constant 129 : index
    %61 = vector.load %arg5[%c0_41, %c129] : memref<8x1024xf32, #tpu.memory_space<vmem>>, vector<8x768xf32>
    %cst_42 = arith.constant dense<0.000000e+00> : vector<8x768xf32>
    %62 = tpu.matmul %60, %61, %cst_42 {dimension_numbers = #tpu.dot_dimension_numbers<[1], [0], [0], [1], [0, 0, 1, 1], [], []>} : vector<8x8xf32>, vector<8x768xf32>, vector<8x768xf32> -> vector<8x768xf32>
    %63 = arith.addf %59, %62 : vector<8x768xf32>
    %c0_43 = arith.constant 0 : index
    %c84 = arith.constant 84 : index
    %64 = vector.load %arg2[%c0_43, %c84] : memref<8x128xf32, #tpu.memory_space<vmem>>, vector<8x8xf32>
    %c0_44 = arith.constant 0 : index
    %c145 = arith.constant 145 : index
    %65 = vector.load %arg5[%c0_44, %c145] : memref<8x1024xf32, #tpu.memory_space<vmem>>, vector<8x768xf32>
    %cst_45 = arith.constant dense<0.000000e+00> : vector<8x768xf32>
    %66 = tpu.matmul %64, %65, %cst_45 {dimension_numbers = #tpu.dot_dimension_numbers<[1], [0], [0], [1], [0, 0, 1, 1], [], []>} : vector<8x8xf32>, vector<8x768xf32>, vector<8x768xf32> -> vector<8x768xf32>
    %67 = arith.addf %63, %66 : vector<8x768xf32>
    %c0_46 = arith.constant 0 : index
    %c92 = arith.constant 92 : index
    %68 = vector.load %arg2[%c0_46, %c92] : memref<8x128xf32, #tpu.memory_space<vmem>>, vector<8x8xf32>
    %c0_47 = arith.constant 0 : index
    %c146 = arith.constant 146 : index
    %69 = vector.load %arg5[%c0_47, %c146] : memref<8x1024xf32, #tpu.memory_space<vmem>>, vector<8x768xf32>
    %cst_48 = arith.constant dense<0.000000e+00> : vector<8x768xf32>
    %70 = tpu.matmul %68, %69, %cst_48 {dimension_numbers = #tpu.dot_dimension_numbers<[1], [0], [0], [1], [0, 0, 1, 1], [], []>} : vector<8x8xf32>, vector<8x768xf32>, vector<8x768xf32> -> vector<8x768xf32>
    %71 = arith.addf %67, %70 : vector<8x768xf32>
    %c0_49 = arith.constant 0 : index
    %c100 = arith.constant 100 : index
    %72 = vector.load %arg2[%c0_49, %c100] : memref<8x128xf32, #tpu.memory_space<vmem>>, vector<8x8xf32>
    %c0_50 = arith.constant 0 : index
    %c147 = arith.constant 147 : index
    %73 = vector.load %arg5[%c0_50, %c147] : memref<8x1024xf32, #tpu.memory_space<vmem>>, vector<8x768xf32>
    %cst_51 = arith.constant dense<0.000000e+00> : vector<8x768xf32>
    %74 = tpu.matmul %72, %73, %cst_51 {dimension_numbers = #tpu.dot_dimension_numbers<[1], [0], [0], [1], [0, 0, 1, 1], [], []>} : vector<8x8xf32>, vector<8x768xf32>, vector<8x768xf32> -> vector<8x768xf32>
    %75 = arith.addf %71, %74 : vector<8x768xf32>
    %76 = arith.mulf %75, %2 : vector<8x768xf32>
    %cst_52 = arith.constant dense<0.000000e+00> : vector<8xf32>
    %77 = vector.multi_reduction <add>, %76, %cst_52 [1] : vector<8x768xf32> to vector<8xf32>
    %78 = vector.shape_cast %77 : vector<8xf32> to vector<8x1xf32>
    %cst_53 = arith.constant 0.001953125 : f32
    %79 = vector.broadcast %cst_53 : f32 to vector<8x1xf32>
    %80 = arith.mulf %78, %79 : vector<8x1xf32>
    %81 = arith.mulf %76, %75 : vector<8x768xf32>
    %cst_54 = arith.constant dense<0.000000e+00> : vector<8xf32>
    %82 = vector.multi_reduction <add>, %81, %cst_54 [1] : vector<8x768xf32> to vector<8xf32>
    %83 = vector.shape_cast %82 : vector<8xf32> to vector<8x1xf32>
    %cst_55 = arith.constant 0.001953125 : f32
    %84 = vector.broadcast %cst_55 : f32 to vector<8x1xf32>
    %85 = arith.mulf %83, %84 : vector<8x1xf32>
    %86 = arith.mulf %80, %80 : vector<8x1xf32>
    %87 = arith.subf %85, %86 : vector<8x1xf32>
    %88 = vector.broadcast %80 : vector<8x1xf32> to vector<8x768xf32>
    %89 = arith.subf %75, %88 : vector<8x768xf32>
    %cst_56 = arith.constant 9.99999974E-6 : f32
    %90 = vector.broadcast %cst_56 : f32 to vector<8x1xf32>
    %91 = arith.addf %87, %90 : vector<8x1xf32>
    %92 = math.rsqrt %91 : vector<8x1xf32>
    %93 = vector.broadcast %92 : vector<8x1xf32> to vector<8x768xf32>
    %94 = arith.mulf %89, %93 : vector<8x768xf32>
    %95 = vector.broadcast %5 : vector<8x1xf32> to vector<8x768xf32>
    %96 = arith.mulf %94, %95 : vector<8x768xf32>
    %97 = vector.broadcast %6 : vector<8x1xf32> to vector<8x768xf32>
    %98 = arith.addf %96, %97 : vector<8x768xf32>
    %cst_57 = arith.constant 0.000000e+00 : f32
    %99 = vector.broadcast %cst_57 : f32 to vector<8x768xf32>
    %100 = arith.maximumf %98, %99 : vector<8x768xf32>
    %c0_58 = arith.constant 0 : index
    %c0_59 = arith.constant 0 : index
    %101 = vector.load %arg4[%c0_58, %c0_59] : memref<8x768xf32, #tpu.memory_space<vmem>>, vector<8x768xf32>
    tpu.vector_store %arg4[%c0_58, %c0_59], %100 {strides = array<i32>} : memref<8x768xf32, #tpu.memory_space<vmem>>, vector<8x768xf32>,
    return
  }
  func.func @transform_0(%arg0: i32) -> (i32, i32) {
    %c0_i32 = arith.constant 0 : i32
    %c0_i32_0 = arith.constant 0 : i32
    %c0_i32_1 = arith.constant 0 : i32
    return %c0_i32, %c0_i32_0 : i32, i32
  }
  func.func @transform_1(%arg0: i32) -> (i32, i32) {
    %c0_i32 = arith.constant 0 : i32
    %c0_i32_0 = arith.constant 0 : i32
    %c0_i32_1 = arith.constant 0 : i32
    return %c0_i32, %c0_i32_0 : i32, i32
  }
  func.func @transform_2(%arg0: i32) -> (i32, i32) {
    %c0_i32 = arith.constant 0 : i32
    %c0_i32_0 = arith.constant 0 : i32
    %c0_i32_1 = arith.constant 0 : i32
    return %c0_i32, %c0_i32_0 : i32, i32
  }
  func.func @transform_3(%arg0: i32) -> (i32, i32) {
    %c0_i32 = arith.constant 0 : i32
    %c0_i32_0 = arith.constant 0 : i32
    %c0_i32_1 = arith.constant 0 : i32
    return %c0_i32, %c0_i32_0 : i32, i32
  }
}

</mosaic_0001>

<llo_original>
// kernel: convb_forward.1
$region0: #{convb_forward.1}
  #allocation0 [shape = 'u32[]', space=smem, size = 0x4, offset = 0x4, fixed_abs, tag = 'smem constant byte address 0x4 - core index']
  #allocation1 [shape = 'u32[144,128]{1,0:T(1,128)}', space=vmem, size = 0x12000, scoped, tag = 'internal scratch']
  #allocation2 [shape = 'f32[8,1024]{1,0:T(8,128)}', space=vmem, size = 0x8000, scoped, tag = 'scratch operand']
  %s0 = inlined_call_operand.vmem [shape: f32[36,768], index: 0, kind: input, shape index: {}]
  %s1 = inlined_call_operand.vmem [shape: f32[8,128], index: 1, kind: input, shape index: {}]
  %s2 = inlined_call_operand.vmem [shape: f32[1,768], index: 2, kind: input, shape index: {}]
  %s3 = inlined_call_operand.vmem [shape: f32[8,768], index: 3, kind: output, shape index: {}]
  %s4 = sld [smem:[#allocation0]]
  $region22: #{convb_forward.1} parent=0
    _
  %s6 = ssub.s32 1, %s4
  %s7 = scalar_select 0, %s6, %s4
  // Predicated region
  $region2: #{convb_forward.1} parent=0 // pred_check
    _
  $region3: #{convb_forward.1} parent=0 // pred_check_branch
    %9 = sbr.rel (0) target = $region5
  $region4: #{convb_forward.1} parent=0 // pred_region
    _
  $region5: #{convb_forward.1} parent=0 // pred_fallthru
    _
  // Predicated region
  $region6: #{convb_forward.1} parent=0 // pred_check
    _
  $region7: #{convb_forward.1} parent=0 // pred_check_branch
    %11 = sbr.rel (0) target = $region9
  $region8: #{convb_forward.1} parent=0 // pred_region
    _
  $region9: #{convb_forward.1} parent=0 // pred_fallthru
    _
  // Predicated region
  $region10: #{convb_forward.1} parent=0 // pred_check
    _
  $region11: #{convb_forward.1} parent=0 // pred_check_branch
    %13 = sbr.rel (0) target = $region13
  $region12: #{convb_forward.1} parent=0 // pred_region
    _
  $region13: #{convb_forward.1} parent=0 // pred_fallthru
    _
  %v14 = vld [vmem:[%s2] sm:$0x3f]
  %v16 = vlaneseq
  %v17 = vshrl.u32 %v16, 7
  %v18 = vsub.s32 0, %v17
  %v19 = vrot.slane %v14, %v18
  %v20 = vlaneseq
  %v21 = vshrl.u32 %v20, 7
  %v22 = vsub.s32 1, %v21
  %v23 = vrot.slane %v14, %v22
  %v24 = vlaneseq
  %v25 = vshrl.u32 %v24, 7
  %v26 = vsub.s32 2, %v25
  %v27 = vrot.slane %v14, %v26
  %v28 = vlaneseq
  %v29 = vshrl.u32 %v28, 7
  %v30 = vsub.s32 3, %v29
  %v31 = vrot.slane %v14, %v30
  %v32 = vlaneseq
  %v33 = vshrl.u32 %v32, 7
  %v34 = vsub.s32 4, %v33
  %v35 = vrot.slane %v14, %v34
  %v36 = vlaneseq
  %v37 = vshrl.u32 %v36, 7
  %v38 = vsub.s32 5, %v37
  %v39 = vrot.slane %v14, %v38
  %v46 = vld [vmem:[%s1] sm:$0xff]
  %v47 = vld [vmem:[%s0] sm:$0xff]
  %v48 = vld [vmem:[%s0 + $0x8] sm:$0xff]
  %v49 = vld [vmem:[%s0 + $0x10] sm:$0xff]
  %v50 = vld [vmem:[%s0 + $0x18] sm:$0xff]
  %v51 = vld [vmem:[%s0 + $0x20] sm:$0xff]
  %v52 = vld [vmem:[%s0 + $0x28] sm:$0xff]
  %v53 = vld [vmem:[%s0 + $0x30] sm:$0xff]
  %v54 = vld [vmem:[%s0 + $0x38] sm:$0xff]
  %v55 = vld [vmem:[%s0 + $0x40] sm:$0xff]
  %v56 = vld [vmem:[%s0 + $0x48] sm:$0xff]
  %v57 = vld [vmem:[%s0 + $0x50] sm:$0xff]
  %v58 = vld [vmem:[%s0 + $0x58] sm:$0xff]
  %v59 = vld [vmem:[%s0 + $0x60] sm:$0xff]
  %v60 = vld [vmem:[%s0 + $0x68] sm:$0xff]
  %v61 = vld [vmem:[%s0 + $0x70] sm:$0xff]
  %v62 = vld [vmem:[%s0 + $0x78] sm:$0xff]
  %v63 = vld [vmem:[%s0 + $0x80] sm:$0xff]
  %v64 = vld [vmem:[%s0 + $0x88] sm:$0xff]
  %v65 = vld [vmem:[%s0 + $0x90] sm:$0xff]
  %v66 = vld [vmem:[%s0 + $0x98] sm:$0xff]
  %v67 = vld [vmem:[%s0 + $0xa0] sm:$0xff]
  %v68 = vld [vmem:[%s0 + $0xa8] sm:$0xff]
  %v69 = vld [vmem:[%s0 + $0xb0] sm:$0xff]
  %v70 = vld [vmem:[%s0 + $0xb8] sm:$0xff]
  %v71 = vld [vmem:[%s0 + $0xc0] sm:$0xf]
  %v72 = vld [vmem:[%s0 + $0xc8] sm:$0xf]
  %v73 = vld [vmem:[%s0 + $0xd0] sm:$0xf]
  %v74 = vld [vmem:[%s0 + $0xd8] sm:$0xf]
  %v75 = vld [vmem:[%s0 + $0xe0] sm:$0xf]
  %v76 = vld [vmem:[%s0 + $0xe8] sm:$0xf]
  %vm77 = vcmask 293888
  %v79 = vsel %vm77, %v46, 0
  %vm81 = vcmask 1043456
  %v83 = vsel %vm81, %v71, 0
  %v86 = vsel %vm81, %v72, 0
  %v89 = vsel %vm81, %v73, 0
  %v92 = vsel %vm81, %v74, 0
  %v95 = vsel %vm81, %v75, 0
  %v98 = vsel %vm81, %v76, 0
  %100 = vmatprep.subr.mxu0 %v48
  %101 = vmatpush1.msra.mxu0 %v47
  %102 = vmatprep.subr.mxu0 %v54
  %103 = vmatpush1.msra.mxu0 %v53
  %104 = vmatprep.subr.mxu0 %v60
  %105 = vmatpush1.msra.mxu0 %v59
  %106 = vmatprep.subr.mxu0 %v66
  %107 = vmatpush1.msra.mxu0 %v65
  %108 = vmatprep.subr.mxu0 %v86
  %109 = vmatpush1.msra.mxu0 %v83
  %110 = vmatprep.subr.mxu0 0.0
  %111 = vmatpush1.msra.mxu0 0.0
  %112 = vmatprep.subr.mxu0 0.0
  %113 = vmatpush1.msra.mxu0 0.0
  %114 = vmatprep.subr.mxu0 0.0
  %115 = vmatpush1.msra.mxu0 0.0
  %116 = vmatprep.subr.mxu0 0.0
  %117 = vmatpush1.msra.mxu0 0.0
  %118 = vmatprep.subr.mxu0 0.0
  %119 = vmatpush1.msra.mxu0 0.0
  %120 = vmatprep.subr.mxu0 0.0
  %121 = vmatpush1.msra.mxu0 0.0
  %122 = vmatprep.subr.mxu0 0.0
  %123 = vmatpush1.msra.mxu0 0.0
  %124 = vmatprep.subr.mxu0 0.0
  %125 = vmatpush1.msra.mxu0 0.0
  %126 = vmatprep.subr.mxu0 0.0
  %127 = vmatpush1.msra.mxu0 0.0
  %128 = vmatprep.subr.mxu0 0.0
  %129 = vmatpush1.msra.mxu0 0.0
  %130 = vmatprep.subr.mxu0 0.0
  %131 = vmatpush1.msra.mxu0 0.0
  %132 = vmatprep.subr.mxu0 0.0
  %133 = vmatpush1.msra.mxu0 0.0
  %134 = vmatprep.subr.mxu0 0.0
  %135 = vmatpush1.msra.mxu0 0.0
  %136 = vmatprep.subr.mxu0 0.0
  %137 = vmatpush1.msra.mxu0 0.0
  %138 = vmatprep.subr.mxu0 0.0
  %139 = vmatpush1.msra.mxu0 0.0
  %140 = vmatprep.subr.mxu0 0.0
  %141 = vmatpush1.msra.mxu0 0.0
  %142 = vmatprep.subr.mxu0 0.0
  %143 = vmatpush1.msra.mxu0 0.0
  %144 = vmatprep.subr.mxu0 0.0
  %145 = vmatpush1.msra.mxu0 0.0
  %146 = vmatprep.subr.mxu0 0.0
  %147 = vmatpush1.msra.mxu0 0.0
  %148 = vmatprep.subr.mxu0 0.0
  %149 = vmatpush1.msra.mxu0 0.0
  %150 = vmatprep.subr.mxu0 0.0
  %151 = vmatpush1.msra.mxu0 0.0
  %152 = vmatprep.subr.mxu0 0.0
  %153 = vmatpush1.msra.mxu0 0.0
  %154 = vmatprep.subr.mxu0 0.0
  %155 = vmatpush1.msra.mxu0 0.0
  %156 = vmatprep.subr.mxu0 0.0
  %157 = vmatpush1.msra.mxu0 0.0
  %158 = vmatprep.subr.mxu0 0.0
  %159 = vmatpush1.msra.mxu0 0.0
  %160 = vmatprep.subr.mxu0 0.0
  %161 = vmatpush1.msra.mxu0 0.0
  %162 = vmatprep.subr.mxu0 0.0
  %163 = vmatpush1.msra.mxu0 0.0
  %164 = vmatprep.mubr.f32.mxu0 0.0
  %165 = vmatmul.mubr.f32.gmra.mrb[0].mxu0 %v79
  %v166 = vpop.f32.mrb[0].mxu0
  %v167 = vadd.f32 0.0, %v166
  %v168 = vpop.f32.mrb[0].mxu0
  %v169 = vadd.f32 0.0, %v168
  %170 = vdwg.mxu0
  %171 = vmatprep.subr.mxu0 %v50
  %172 = vmatpush1.msra.mxu0 %v49
  %173 = vmatprep.subr.mxu0 %v56
  %174 = vmatpush1.msra.mxu0 %v55
  %175 = vmatprep.subr.mxu0 %v62
  %176 = vmatpush1.msra.mxu0 %v61
  %177 = vmatprep.subr.mxu0 %v68
  %178 = vmatpush1.msra.mxu0 %v67
  %179 = vmatprep.subr.mxu0 %v92
  %180 = vmatpush1.msra.mxu0 %v89
  %181 = vmatprep.subr.mxu0 0.0
  %182 = vmatpush1.msra.mxu0 0.0
  %183 = vmatprep.subr.mxu0 0.0
  %184 = vmatpush1.msra.mxu0 0.0
  %185 = vmatprep.subr.mxu0 0.0
  %186 = vmatpush1.msra.mxu0 0.0
  %187 = vmatprep.subr.mxu0 0.0
  %188 = vmatpush1.msra.mxu0 0.0
  %189 = vmatprep.subr.mxu0 0.0
  %190 = vmatpush1.msra.mxu0 0.0
  %191 = vmatprep.subr.mxu0 0.0
  %192 = vmatpush1.msra.mxu0 0.0
  %193 = vmatprep.subr.mxu0 0.0
  %194 = vmatpush1.msra.mxu0 0.0
  %195 = vmatprep.subr.mxu0 0.0
  %196 = vmatpush1.msra.mxu0 0.0
  %197 = vmatprep.subr.mxu0 0.0
  %198 = vmatpush1.msra.mxu0 0.0
  %199 = vmatprep.subr.mxu0 0.0
  %200 = vmatpush1.msra.mxu0 0.0
  %201 = vmatprep.subr.mxu0 0.0
  %202 = vmatpush1.msra.mxu0 0.0
  %203 = vmatprep.subr.mxu0 0.0
  %204 = vmatpush1.msra.mxu0 0.0
  %205 = vmatprep.subr.mxu0 0.0
  %206 = vmatpush1.msra.mxu0 0.0
  %207 = vmatprep.subr.mxu0 0.0
  %208 = vmatpush1.msra.mxu0 0.0
  %209 = vmatprep.subr.mxu0 0.0
  %210 = vmatpush1.msra.mxu0 0.0
  %211 = vmatprep.subr.mxu0 0.0
  %212 = vmatpush1.msra.mxu0 0.0
  %213 = vmatprep.subr.mxu0 0.0
  %214 = vmatpush1.msra.mxu0 0.0
  %215 = vmatprep.subr.mxu0 0.0
  %216 = vmatpush1.msra.mxu0 0.0
  %217 = vmatprep.subr.mxu0 0.0
  %218 = vmatpush1.msra.mxu0 0.0
  %219 = vmatprep.subr.mxu0 0.0
  %220 = vmatpush1.msra.mxu0 0.0
  %221 = vmatprep.subr.mxu0 0.0
  %222 = vmatpush1.msra.mxu0 0.0
  %223 = vmatprep.subr.mxu0 0.0
  %224 = vmatpush1.msra.mxu0 0.0
  %225 = vmatprep.subr.mxu0 0.0
  %226 = vmatpush1.msra.mxu0 0.0
  %227 = vmatprep.subr.mxu0 0.0
  %228 = vmatpush1.msra.mxu0 0.0
  %229 = vmatprep.subr.mxu0 0.0
  %230 = vmatpush1.msra.mxu0 0.0
  %231 = vmatprep.subr.mxu0 0.0
  %232 = vmatpush1.msra.mxu0 0.0
  %233 = vmatprep.subr.mxu0 0.0
  %234 = vmatpush1.msra.mxu0 0.0
  %235 = vmatprep.mubr.f32.mxu0 0.0
  %236 = vmatmul.mubr.f32.gmra.mrb[0].mxu0 %v79
  %v237 = vpop.f32.mrb[0].mxu0
  %v238 = vadd.f32 0.0, %v237
  %v239 = vpop.f32.mrb[0].mxu0
  %v240 = vadd.f32 0.0, %v239
  %241 = vdwg.mxu0
  %242 = vmatprep.subr.mxu0 %v52
  %243 = vmatpush1.msra.mxu0 %v51
  %244 = vmatprep.subr.mxu0 %v58
  %245 = vmatpush1.msra.mxu0 %v57
  %246 = vmatprep.subr.mxu0 %v64
  %247 = vmatpush1.msra.mxu0 %v63
  %248 = vmatprep.subr.mxu0 %v70
  %249 = vmatpush1.msra.mxu0 %v69
  %250 = vmatprep.subr.mxu0 %v98
  %251 = vmatpush1.msra.mxu0 %v95
  %252 = vmatprep.subr.mxu0 0.0
  %253 = vmatpush1.msra.mxu0 0.0
  %254 = vmatprep.subr.mxu0 0.0
  %255 = vmatpush1.msra.mxu0 0.0
  %256 = vmatprep.subr.mxu0 0.0
  %257 = vmatpush1.msra.mxu0 0.0
  %258 = vmatprep.subr.mxu0 0.0
  %259 = vmatpush1.msra.mxu0 0.0
  %260 = vmatprep.subr.mxu0 0.0
  %261 = vmatpush1.msra.mxu0 0.0
  %262 = vmatprep.subr.mxu0 0.0
  %263 = vmatpush1.msra.mxu0 0.0
  %264 = vmatprep.subr.mxu0 0.0
  %265 = vmatpush1.msra.mxu0 0.0
  %266 = vmatprep.subr.mxu0 0.0
  %267 = vmatpush1.msra.mxu0 0.0
  %268 = vmatprep.subr.mxu0 0.0
  %269 = vmatpush1.msra.mxu0 0.0
  %270 = vmatprep.subr.mxu0 0.0
  %271 = vmatpush1.msra.mxu0 0.0
  %272 = vmatprep.subr.mxu0 0.0
  %273 = vmatpush1.msra.mxu0 0.0
  %274 = vmatprep.subr.mxu0 0.0
  %275 = vmatpush1.msra.mxu0 0.0
  %276 = vmatprep.subr.mxu0 0.0
  %277 = vmatpush1.msra.mxu0 0.0
  %278 = vmatprep.subr.mxu0 0.0
  %279 = vmatpush1.msra.mxu0 0.0
  %280 = vmatprep.subr.mxu0 0.0
  %281 = vmatpush1.msra.mxu0 0.0
  %282 = vmatprep.subr.mxu0 0.0
  %283 = vmatpush1.msra.mxu0 0.0
  %284 = vmatprep.subr.mxu0 0.0
  %285 = vmatpush1.msra.mxu0 0.0
  %286 = vmatprep.subr.mxu0 0.0
  %287 = vmatpush1.msra.mxu0 0.0
  %288 = vmatprep.subr.mxu0 0.0
  %289 = vmatpush1.msra.mxu0 0.0
  %290 = vmatprep.subr.mxu0 0.0
  %291 = vmatpush1.msra.mxu0 0.0
  %292 = vmatprep.subr.mxu0 0.0
  %293 = vmatpush1.msra.mxu0 0.0
  %294 = vmatprep.subr.mxu0 0.0
  %295 = vmatpush1.msra.mxu0 0.0
  %296 = vmatprep.subr.mxu0 0.0
  %297 = vmatpush1.msra.mxu0 0.0
  %298 = vmatprep.subr.mxu0 0.0
  %299 = vmatpush1.msra.mxu0 0.0
  %300 = vmatprep.subr.mxu0 0.0
  %301 = vmatpush1.msra.mxu0 0.0
  %302 = vmatprep.subr.mxu0 0.0
  %303 = vmatpush1.msra.mxu0 0.0
  %304 = vmatprep.subr.mxu0 0.0
  %305 = vmatpush1.msra.mxu0 0.0
  %306 = vmatprep.mubr.f32.mxu0 0.0
  %307 = vmatmul.mubr.f32.gmra.mrb[0].mxu0 %v79
  %v308 = vpop.f32.mrb[0].mxu0
  %v309 = vadd.f32 0.0, %v308
  %v310 = vpop.f32.mrb[0].mxu0
  %v311 = vadd.f32 0.0, %v310
  %312 = vdwg.mxu0
  %v313 = vmul.f32 %v167, %v19
  %v314 = vmul.f32 %v169, %v23
  %v315 = vmul.f32 %v238, %v27
  %v316 = vmul.f32 %v240, %v31
  %v317 = vmul.f32 %v309, %v35
  %v318 = vmul.f32 %v311, %v39
  %v319 = vadd.f32 %v313, %v314
  %v320 = vadd.f32 %v319, %v315
  %v321 = vadd.f32 %v320, %v316
  %v322 = vadd.f32 %v321, %v317
  %v323 = vadd.f32 %v322, %v318
  %324 = vadd.xlane.f32.xlu0 %v323
  %v325 = vpop.xlane.xlu0 %324
  %v326 = vmul.f32 %v325, 0.001953125
  %v327 = vmul.f32 %v313, %v167
  %v328 = vmul.f32 %v314, %v169
  %v329 = vmul.f32 %v315, %v238
  %v330 = vmul.f32 %v316, %v240
  %v331 = vmul.f32 %v317, %v309
  %v332 = vmul.f32 %v318, %v311
  %v333 = vadd.f32 %v327, %v328
  %v334 = vadd.f32 %v333, %v329
  %v335 = vadd.f32 %v334, %v330
  %v336 = vadd.f32 %v335, %v331
  %v337 = vadd.f32 %v336, %v332
  %338 = vadd.xlane.f32.xlu0 %v337
  %v339 = vpop.xlane.xlu0 %338
  %v340 = vmul.f32 %v339, 0.001953125
  %v341 = vmul.f32 %v326, %v326
  %v342 = vsub.f32 %v340, %v341
  %v343 = vsub.f32 %v167, %v326
  %v344 = vsub.f32 %v169, %v326
  %v345 = vsub.f32 %v238, %v326
  %v346 = vsub.f32 %v240, %v326
  %v347 = vsub.f32 %v309, %v326
  %v348 = vsub.f32 %v311, %v326
  %v349 = vadd.f32 %v342, 1e-05
  %v350 = vrsqrt.pop %v349
  %v351 = vmul.f32 %v343, %v350
  %v352 = vmul.f32 %v344, %v350
  %v353 = vmul.f32 %v345, %v350
  %v354 = vmul.f32 %v346, %v350
  %v355 = vmul.f32 %v347, %v350
  %v356 = vmul.f32 %v348, %v350
  %357 = vset.pattern.permute.xlu0 108
  %358 = vperm.xlu0 %357, %v46
  %v359 = vpop.permute.xlu0 %358
  %v361 = vmul.f32 %v351, %v359
  %v362 = vmul.f32 %v352, %v359
  %v363 = vmul.f32 %v353, %v359
  %v364 = vmul.f32 %v354, %v359
  %v365 = vmul.f32 %v355, %v359
  %v366 = vmul.f32 %v356, %v359
  %367 = vset.pattern.permute.xlu0 109
  %368 = vperm.xlu0 %367, %v46
  %v369 = vpop.permute.xlu0 %368
  %v371 = vadd.f32 %v361, %v369
  %v372 = vadd.f32 %v362, %v369
  %v373 = vadd.f32 %v363, %v369
  %v374 = vadd.f32 %v364, %v369
  %v375 = vadd.f32 %v365, %v369
  %v376 = vadd.f32 %v366, %v369
  %v377 = vmax.f32 %v371, 0.0
  %v378 = vmax.f32 %v372, 0.0
  %v379 = vmax.f32 %v373, 0.0
  %v380 = vmax.f32 %v374, 0.0
  %v381 = vmax.f32 %v375, 0.0
  %v382 = vmax.f32 %v376, 0.0
  %v383 = vmul.f32 %v377, %v19
  %v384 = vmul.f32 %v378, %v23
  %v385 = vmul.f32 %v379, %v27
  %v386 = vmul.f32 %v380, %v31
  %v387 = vmul.f32 %v381, %v35
  %v388 = vmul.f32 %v382, %v39
  %389 = vst [vmem:[#allocation2] sm:$0xff] 0.0
  %390 = vst [vmem:[#allocation2 + $0x38] sm:$0xff] 0.0
  %391 = vst [vmem:[#allocation2 + $0x8] sm:$0xff] %v383
  %392 = vst [vmem:[#allocation2 + $0x10] sm:$0xff] %v384
  %393 = vst [vmem:[#allocation2 + $0x18] sm:$0xff] %v385
  %394 = vst [vmem:[#allocation2 + $0x20] sm:$0xff] %v386
  %395 = vst [vmem:[#allocation2 + $0x28] sm:$0xff] %v387
  %396 = vst [vmem:[#allocation2 + $0x30] sm:$0xff] %v388
  %v397 = vld [vmem:[%s1] sm:$0xff]
  %v398 = vld [vmem:[#allocation2] sm:$0xff]
  %v399 = vld [vmem:[#allocation2 + $0x8] sm:$0xff]
  %v400 = vld [vmem:[#allocation2 + $0x10] sm:$0xff]
  %v401 = vld [vmem:[#allocation2 + $0x18] sm:$0xff]
  %v402 = vld [vmem:[#allocation2 + $0x20] sm:$0xff]
  %v403 = vld [vmem:[#allocation2 + $0x28] sm:$0xff]
  %v404 = vld [vmem:[#allocation2 + $0x30] sm:$0xff]
  %406 = vrot.lane.b32.xlu0 %v397, 84
  %v407 = vpop.permute.xlu0 %406
  %415 = vrot.lane.b32.xlu0 %v398, 18
  %v416 = vpop.permute.xlu0 %415
  %417 = vrot.lane.b32.xlu0 %v399, 18
  %v418 = vpop.permute.xlu0 %417
  %419 = vrot.lane.b32.xlu0 %v400, 18
  %v420 = vpop.permute.xlu0 %419
  %421 = vrot.lane.b32.xlu0 %v401, 18
  %v422 = vpop.permute.xlu0 %421
  %423 = vrot.lane.b32.xlu0 %v402, 18
  %v424 = vpop.permute.xlu0 %423
  %425 = vrot.lane.b32.xlu0 %v403, 18
  %v426 = vpop.permute.xlu0 %425
  %427 = vrot.lane.b32.xlu0 %v404, 18
  %v428 = vpop.permute.xlu0 %427
  %vm429 = vcmask 146432
  %v430 = vsel %vm429, %v416, %v418
  %v431 = vsel %vm429, %v418, %v420
  %v432 = vsel %vm429, %v420, %v422
  %v433 = vsel %vm429, %v422, %v424
  %v434 = vsel %vm429, %v424, %v426
  %v435 = vsel %vm429, %v426, %v428
  %vm442 = vcmask 64512
  %v443 = vsel %vm442, %v407, 0
  %445 = vmatprep.subr.mxu0 %v431
  %446 = vmatpush1.msra.mxu0 %v430
  %447 = vmatprep.subr.mxu0 0.0
  %448 = vmatpush1.msra.mxu0 0.0
  %449 = vmatprep.subr.mxu0 0.0
  %450 = vmatpush1.msra.mxu0 0.0
  %451 = vmatprep.subr.mxu0 0.0
  %452 = vmatpush1.msra.mxu0 0.0
  %453 = vmatprep.subr.mxu0 0.0
  %454 = vmatpush1.msra.mxu0 0.0
  %455 = vmatprep.subr.mxu0 0.0
  %456 = vmatpush1.msra.mxu0 0.0
  %457 = vmatprep.subr.mxu0 0.0
  %458 = vmatpush1.msra.mxu0 0.0
  %459 = vmatprep.subr.mxu0 0.0
  %460 = vmatpush1.msra.mxu0 0.0
  %461 = vmatprep.subr.mxu0 0.0
  %462 = vmatpush1.msra.mxu0 0.0
  %463 = vmatprep.subr.mxu0 0.0
  %464 = vmatpush1.msra.mxu0 0.0
  %465 = vmatprep.subr.mxu0 0.0
  %466 = vmatpush1.msra.mxu0 0.0
  %467 = vmatprep.subr.mxu0 0.0
  %468 = vmatpush1.msra.mxu0 0.0
  %469 = vmatprep.subr.mxu0 0.0
  %470 = vmatpush1.msra.mxu0 0.0
  %471 = vmatprep.subr.mxu0 0.0
  %472 = vmatpush1.msra.mxu0 0.0
  %473 = vmatprep.subr.mxu0 0.0
  %474 = vmatpush1.msra.mxu0 0.0
  %475 = vmatprep.subr.mxu0 0.0
  %476 = vmatpush1.msra.mxu0 0.0
  %477 = vmatprep.subr.mxu0 0.0
  %478 = vmatpush1.msra.mxu0 0.0
  %479 = vmatprep.subr.mxu0 0.0
  %480 = vmatpush1.msra.mxu0 0.0
  %481 = vmatprep.subr.mxu0 0.0
  %482 = vmatpush1.msra.mxu0 0.0
  %483 = vmatprep.subr.mxu0 0.0
  %484 = vmatpush1.msra.mxu0 0.0
  %485 = vmatprep.subr.mxu0 0.0
  %486 = vmatpush1.msra.mxu0 0.0
  %487 = vmatprep.subr.mxu0 0.0
  %488 = vmatpush1.msra.mxu0 0.0
  %489 = vmatprep.subr.mxu0 0.0
  %490 = vmatpush1.msra.mxu0 0.0
  %491 = vmatprep.subr.mxu0 0.0
  %492 = vmatpush1.msra.mxu0 0.0
  %493 = vmatprep.subr.mxu0 0.0
  %494 = vmatpush1.msra.mxu0 0.0
  %495 = vmatprep.subr.mxu0 0.0
  %496 = vmatpush1.msra.mxu0 0.0
  %497 = vmatprep.subr.mxu0 0.0
  %498 = vmatpush1.msra.mxu0 0.0
  %499 = vmatprep.subr.mxu0 0.0
  %500 = vmatpush1.msra.mxu0 0.0
  %501 = vmatprep.subr.mxu0 0.0
  %502 = vmatpush1.msra.mxu0 0.0
  %503 = vmatprep.subr.mxu0 0.0
  %504 = vmatpush1.msra.mxu0 0.0
  %505 = vmatprep.subr.mxu0 0.0
  %506 = vmatpush1.msra.mxu0 0.0
  %507 = vmatprep.subr.mxu0 0.0
  %508 = vmatpush1.msra.mxu0 0.0
  %509 = vmatprep.mubr.f32.mxu0 0.0
  %510 = vmatmul.mubr.f32.gmra.mrb[0].mxu0 %v443
  %v511 = vpop.f32.mrb[0].mxu0
  %v512 = vadd.f32 0.0, %v511
  %v513 = vpop.f32.mrb[0].mxu0
  %v514 = vadd.f32 0.0, %v513
  %515 = vdwg.mxu0
  %516 = vmatprep.subr.mxu0 %v433
  %517 = vmatpush1.msra.mxu0 %v432
  %518 = vmatprep.subr.mxu0 0.0
  %519 = vmatpush1.msra.mxu0 0.0
  %520 = vmatprep.subr.mxu0 0.0
  %521 = vmatpush1.msra.mxu0 0.0
  %522 = vmatprep.subr.mxu0 0.0
  %523 = vmatpush1.msra.mxu0 0.0
  %524 = vmatprep.subr.mxu0 0.0
  %525 = vmatpush1.msra.mxu0 0.0
  %526 = vmatprep.subr.mxu0 0.0
  %527 = vmatpush1.msra.mxu0 0.0
  %528 = vmatprep.subr.mxu0 0.0
  %529 = vmatpush1.msra.mxu0 0.0
  %530 = vmatprep.subr.mxu0 0.0
  %531 = vmatpush1.msra.mxu0 0.0
  %532 = vmatprep.subr.mxu0 0.0
  %533 = vmatpush1.msra.mxu0 0.0
  %534 = vmatprep.subr.mxu0 0.0
  %535 = vmatpush1.msra.mxu0 0.0
  %536 = vmatprep.subr.mxu0 0.0
  %537 = vmatpush1.msra.mxu0 0.0
  %538 = vmatprep.subr.mxu0 0.0
  %539 = vmatpush1.msra.mxu0 0.0
  %540 = vmatprep.subr.mxu0 0.0
  %541 = vmatpush1.msra.mxu0 0.0
  %542 = vmatprep.subr.mxu0 0.0
  %543 = vmatpush1.msra.mxu0 0.0
  %544 = vmatprep.subr.mxu0 0.0
  %545 = vmatpush1.msra.mxu0 0.0
  %546 = vmatprep.subr.mxu0 0.0
  %547 = vmatpush1.msra.mxu0 0.0
  %548 = vmatprep.subr.mxu0 0.0
  %549 = vmatpush1.msra.mxu0 0.0
  %550 = vmatprep.subr.mxu0 0.0
  %551 = vmatpush1.msra.mxu0 0.0
  %552 = vmatprep.subr.mxu0 0.0
  %553 = vmatpush1.msra.mxu0 0.0
  %554 = vmatprep.subr.mxu0 0.0
  %555 = vmatpush1.msra.mxu0 0.0
  %556 = vmatprep.subr.mxu0 0.0
  %557 = vmatpush1.msra.mxu0 0.0
  %558 = vmatprep.subr.mxu0 0.0
  %559 = vmatpush1.msra.mxu0 0.0
  %560 = vmatprep.subr.mxu0 0.0
  %561 = vmatpush1.msra.mxu0 0.0
  %562 = vmatprep.subr.mxu0 0.0
  %563 = vmatpush1.msra.mxu0 0.0
  %564 = vmatprep.subr.mxu0 0.0
  %565 = vmatpush1.msra.mxu0 0.0
  %566 = vmatprep.subr.mxu0 0.0
  %567 = vmatpush1.msra.mxu0 0.0
  %568 = vmatprep.subr.mxu0 0.0
  %569 = vmatpush1.msra.mxu0 0.0
  %570 = vmatprep.subr.mxu0 0.0
  %571 = vmatpush1.msra.mxu0 0.0
  %572 = vmatprep.subr.mxu0 0.0
  %573 = vmatpush1.msra.mxu0 0.0
  %574 = vmatprep.subr.mxu0 0.0
  %575 = vmatpush1.msra.mxu0 0.0
  %576 = vmatprep.subr.mxu0 0.0
  %577 = vmatpush1.msra.mxu0 0.0
  %578 = vmatprep.subr.mxu0 0.0
  %579 = vmatpush1.msra.mxu0 0.0
  %580 = vmatprep.mubr.f32.mxu0 0.0
  %581 = vmatmul.mubr.f32.gmra.mrb[0].mxu0 %v443
  %v582 = vpop.f32.mrb[0].mxu0
  %v583 = vadd.f32 0.0, %v582
  %v584 = vpop.f32.mrb[0].mxu0
  %v585 = vadd.f32 0.0, %v584
  %586 = vdwg.mxu0
  %587 = vmatprep.subr.mxu0 %v435
  %588 = vmatpush1.msra.mxu0 %v434
  %589 = vmatprep.subr.mxu0 0.0
  %590 = vmatpush1.msra.mxu0 0.0
  %591 = vmatprep.subr.mxu0 0.0
  %592 = vmatpush1.msra.mxu0 0.0
  %593 = vmatprep.subr.mxu0 0.0
  %594 = vmatpush1.msra.mxu0 0.0
  %595 = vmatprep.subr.mxu0 0.0
  %596 = vmatpush1.msra.mxu0 0.0
  %597 = vmatprep.subr.mxu0 0.0
  %598 = vmatpush1.msra.mxu0 0.0
  %599 = vmatprep.subr.mxu0 0.0
  %600 = vmatpush1.msra.mxu0 0.0
  %601 = vmatprep.subr.mxu0 0.0
  %602 = vmatpush1.msra.mxu0 0.0
  %603 = vmatprep.subr.mxu0 0.0
  %604 = vmatpush1.msra.mxu0 0.0
  %605 = vmatprep.subr.mxu0 0.0
  %606 = vmatpush1.msra.mxu0 0.0
  %607 = vmatprep.subr.mxu0 0.0
  %608 = vmatpush1.msra.mxu0 0.0
  %609 = vmatprep.subr.mxu0 0.0
  %610 = vmatpush1.msra.mxu0 0.0
  %611 = vmatprep.subr.mxu0 0.0
  %612 = vmatpush1.msra.mxu0 0.0
  %613 = vmatprep.subr.mxu0 0.0
  %614 = vmatpush1.msra.mxu0 0.0
  %615 = vmatprep.subr.mxu0 0.0
  %616 = vmatpush1.msra.mxu0 0.0
  %617 = vmatprep.subr.mxu0 0.0
  %618 = vmatpush1.msra.mxu0 0.0
  %619 = vmatprep.subr.mxu0 0.0
  %620 = vmatpush1.msra.mxu0 0.0
  %621 = vmatprep.subr.mxu0 0.0
  %622 = vmatpush1.msra.mxu0 0.0
  %623 = vmatprep.subr.mxu0 0.0
  %624 = vmatpush1.msra.mxu0 0.0
  %625 = vmatprep.subr.mxu0 0.0
  %626 = vmatpush1.msra.mxu0 0.0
  %627 = vmatprep.subr.mxu0 0.0
  %628 = vmatpush1.msra.mxu0 0.0
  %629 = vmatprep.subr.mxu0 0.0
  %630 = vmatpush1.msra.mxu0 0.0
  %631 = vmatprep.subr.mxu0 0.0
  %632 = vmatpush1.msra.mxu0 0.0
  %633 = vmatprep.subr.mxu0 0.0
  %634 = vmatpush1.msra.mxu0 0.0
  %635 = vmatprep.subr.mxu0 0.0
  %636 = vmatpush1.msra.mxu0 0.0
  %637 = vmatprep.subr.mxu0 0.0
  %638 = vmatpush1.msra.mxu0 0.0
  %639 = vmatprep.subr.mxu0 0.0
  %640 = vmatpush1.msra.mxu0 0.0
  %641 = vmatprep.subr.mxu0 0.0
  %642 = vmatpush1.msra.mxu0 0.0
  %643 = vmatprep.subr.mxu0 0.0
  %644 = vmatpush1.msra.mxu0 0.0
  %645 = vmatprep.subr.mxu0 0.0
  %646 = vmatpush1.msra.mxu0 0.0
  %647 = vmatprep.subr.mxu0 0.0
  %648 = vmatpush1.msra.mxu0 0.0
  %649 = vmatprep.subr.mxu0 0.0
  %650 = vmatpush1.msra.mxu0 0.0
  %651 = vmatprep.mubr.f32.mxu0 0.0
  %652 = vmatmul.mubr.f32.gmra.mrb[0].mxu0 %v443
  %v653 = vpop.f32.mrb[0].mxu0
  %v654 = vadd.f32 0.0, %v653
  %v655 = vpop.f32.mrb[0].mxu0
  %v656 = vadd.f32 0.0, %v655
  %657 = vdwg.mxu0
  %658 = vrot.lane.b32.xlu0 %v397, 92
  %v659 = vpop.permute.xlu0 %658
  %660 = vrot.lane.b32.xlu0 %v398, 19
  %v661 = vpop.permute.xlu0 %660
  %662 = vrot.lane.b32.xlu0 %v399, 19
  %v663 = vpop.permute.xlu0 %662
  %664 = vrot.lane.b32.xlu0 %v400, 19
  %v665 = vpop.permute.xlu0 %664
  %666 = vrot.lane.b32.xlu0 %v401, 19
  %v667 = vpop.permute.xlu0 %666
  %668 = vrot.lane.b32.xlu0 %v402, 19
  %v669 = vpop.permute.xlu0 %668
  %670 = vrot.lane.b32.xlu0 %v403, 19
  %v671 = vpop.permute.xlu0 %670
  %672 = vrot.lane.b32.xlu0 %v404, 19
  %v673 = vpop.permute.xlu0 %672
  %vm674 = vcmask 154624
  %v675 = vsel %vm674, %v661, %v663
  %v676 = vsel %vm674, %v663, %v665
  %v677 = vsel %vm674, %v665, %v667
  %v678 = vsel %vm674, %v667, %v669
  %v679 = vsel %vm674, %v669, %v671
  %v680 = vsel %vm674, %v671, %v673
  %v687 = vsel %vm442, %v659, 0
  %689 = vmatprep.subr.mxu0 %v676
  %690 = vmatpush1.msra.mxu0 %v675
  %691 = vmatprep.subr.mxu0 0.0
  %692 = vmatpush1.msra.mxu0 0.0
  %693 = vmatprep.subr.mxu0 0.0
  %694 = vmatpush1.msra.mxu0 0.0
  %695 = vmatprep.subr.mxu0 0.0
  %696 = vmatpush1.msra.mxu0 0.0
  %697 = vmatprep.subr.mxu0 0.0
  %698 = vmatpush1.msra.mxu0 0.0
  %699 = vmatprep.subr.mxu0 0.0
  %700 = vmatpush1.msra.mxu0 0.0
  %701 = vmatprep.subr.mxu0 0.0
  %702 = vmatpush1.msra.mxu0 0.0
  %703 = vmatprep.subr.mxu0 0.0
  %704 = vmatpush1.msra.mxu0 0.0
  %705 = vmatprep.subr.mxu0 0.0
  %706 = vmatpush1.msra.mxu0 0.0
  %707 = vmatprep.subr.mxu0 0.0
  %708 = vmatpush1.msra.mxu0 0.0
  %709 = vmatprep.subr.mxu0 0.0
  %710 = vmatpush1.msra.mxu0 0.0
  %711 = vmatprep.subr.mxu0 0.0
  %712 = vmatpush1.msra.mxu0 0.0
  %713 = vmatprep.subr.mxu0 0.0
  %714 = vmatpush1.msra.mxu0 0.0
  %715 = vmatprep.subr.mxu0 0.0
  %716 = vmatpush1.msra.mxu0 0.0
  %717 = vmatprep.subr.mxu0 0.0
  %718 = vmatpush1.msra.mxu0 0.0
  %719 = vmatprep.subr.mxu0 0.0
  %720 = vmatpush1.msra.mxu0 0.0
  %721 = vmatprep.subr.mxu0 0.0
  %722 = vmatpush1.msra.mxu0 0.0
  %723 = vmatprep.subr.mxu0 0.0
  %724 = vmatpush1.msra.mxu0 0.0
  %725 = vmatprep.subr.mxu0 0.0
  %726 = vmatpush1.msra.mxu0 0.0
  %727 = vmatprep.subr.mxu0 0.0
  %728 = vmatpush1.msra.mxu0 0.0
  %729 = vmatprep.subr.mxu0 0.0
  %730 = vmatpush1.msra.mxu0 0.0
  %731 = vmatprep.subr.mxu0 0.0
  %732 = vmatpush1.msra.mxu0 0.0
  %733 = vmatprep.subr.mxu0 0.0
  %734 = vmatpush1.msra.mxu0 0.0
  %735 = vmatprep.subr.mxu0 0.0
  %736 = vmatpush1.msra.mxu0 0.0
  %737 = vmatprep.subr.mxu0 0.0
  %738 = vmatpush1.msra.mxu0 0.0
  %739 = vmatprep.subr.mxu0 0.0
  %740 = vmatpush1.msra.mxu0 0.0
  %741 = vmatprep.subr.mxu0 0.0
  %742 = vmatpush1.msra.mxu0 0.0
  %743 = vmatprep.subr.mxu0 0.0
  %744 = vmatpush1.msra.mxu0 0.0
  %745 = vmatprep.subr.mxu0 0.0
  %746 = vmatpush1.msra.mxu0 0.0
  %747 = vmatprep.subr.mxu0 0.0
  %748 = vmatpush1.msra.mxu0 0.0
  %749 = vmatprep.subr.mxu0 0.0
  %750 = vmatpush1.msra.mxu0 0.0
  %751 = vmatprep.subr.mxu0 0.0
  %752 = vmatpush1.msra.mxu0 0.0
  %753 = vmatprep.mubr.f32.mxu0 0.0
  %754 = vmatmul.mubr.f32.gmra.mrb[0].mxu0 %v687
  %v755 = vpop.f32.mrb[0].mxu0
  %v756 = vadd.f32 %v512, %v755
  %v757 = vpop.f32.mrb[0].mxu0
  %v758 = vadd.f32 %v514, %v757
  %759 = vdwg.mxu0
  %760 = vmatprep.subr.mxu0 %v678
  %761 = vmatpush1.msra.mxu0 %v677
  %762 = vmatprep.subr.mxu0 0.0
  %763 = vmatpush1.msra.mxu0 0.0
  %764 = vmatprep.subr.mxu0 0.0
  %765 = vmatpush1.msra.mxu0 0.0
  %766 = vmatprep.subr.mxu0 0.0
  %767 = vmatpush1.msra.mxu0 0.0
  %768 = vmatprep.subr.mxu0 0.0
  %769 = vmatpush1.msra.mxu0 0.0
  %770 = vmatprep.subr.mxu0 0.0
  %771 = vmatpush1.msra.mxu0 0.0
  %772 = vmatprep.subr.mxu0 0.0
  %773 = vmatpush1.msra.mxu0 0.0
  %774 = vmatprep.subr.mxu0 0.0
  %775 = vmatpush1.msra.mxu0 0.0
  %776 = vmatprep.subr.mxu0 0.0
  %777 = vmatpush1.msra.mxu0 0.0
  %778 = vmatprep.subr.mxu0 0.0
  %779 = vmatpush1.msra.mxu0 0.0
  %780 = vmatprep.subr.mxu0 0.0
  %781 = vmatpush1.msra.mxu0 0.0
  %782 = vmatprep.subr.mxu0 0.0
  %783 = vmatpush1.msra.mxu0 0.0
  %784 = vmatprep.subr.mxu0 0.0
  %785 = vmatpush1.msra.mxu0 0.0
  %786 = vmatprep.subr.mxu0 0.0
  %787 = vmatpush1.msra.mxu0 0.0
  %788 = vmatprep.subr.mxu0 0.0
  %789 = vmatpush1.msra.mxu0 0.0
  %790 = vmatprep.subr.mxu0 0.0
  %791 = vmatpush1.msra.mxu0 0.0
  %792 = vmatprep.subr.mxu0 0.0
  %793 = vmatpush1.msra.mxu0 0.0
  %794 = vmatprep.subr.mxu0 0.0
  %795 = vmatpush1.msra.mxu0 0.0
  %796 = vmatprep.subr.mxu0 0.0
  %797 = vmatpush1.msra.mxu0 0.0
  %798 = vmatprep.subr.mxu0 0.0
  %799 = vmatpush1.msra.mxu0 0.0
  %800 = vmatprep.subr.mxu0 0.0
  %801 = vmatpush1.msra.mxu0 0.0
  %802 = vmatprep.subr.mxu0 0.0
  %803 = vmatpush1.msra.mxu0 0.0
  %804 = vmatprep.subr.mxu0 0.0
  %805 = vmatpush1.msra.mxu0 0.0
  %806 = vmatprep.subr.mxu0 0.0
  %807 = vmatpush1.msra.mxu0 0.0
  %808 = vmatprep.subr.mxu0 0.0
  %809 = vmatpush1.msra.mxu0 0.0
  %810 = vmatprep.subr.mxu0 0.0
  %811 = vmatpush1.msra.mxu0 0.0
  %812 = vmatprep.subr.mxu0 0.0
  %813 = vmatpush1.msra.mxu0 0.0
  %814 = vmatprep.subr.mxu0 0.0
  %815 = vmatpush1.msra.mxu0 0.0
  %816 = vmatprep.subr.mxu0 0.0
  %817 = vmatpush1.msra.mxu0 0.0
  %818 = vmatprep.subr.mxu0 0.0
  %819 = vmatpush1.msra.mxu0 0.0
  %820 = vmatprep.subr.mxu0 0.0
  %821 = vmatpush1.msra.mxu0 0.0
  %822 = vmatprep.subr.mxu0 0.0
  %823 = vmatpush1.msra.mxu0 0.0
  %824 = vmatprep.mubr.f32.mxu0 0.0
  %825 = vmatmul.mubr.f32.gmra.mrb[0].mxu0 %v687
  %v826 = vpop.f32.mrb[0].mxu0
  %v827 = vadd.f32 %v583, %v826
  %v828 = vpop.f32.mrb[0].mxu0
  %v829 = vadd.f32 %v585, %v828
  %830 = vdwg.mxu0
  %831 = vmatprep.subr.mxu0 %v680
  %832 = vmatpush1.msra.mxu0 %v679
  %833 = vmatprep.subr.mxu0 0.0
  %834 = vmatpush1.msra.mxu0 0.0
  %835 = vmatprep.subr.mxu0 0.0
  %836 = vmatpush1.msra.mxu0 0.0
  %837 = vmatprep.subr.mxu0 0.0
  %838 = vmatpush1.msra.mxu0 0.0
  %839 = vmatprep.subr.mxu0 0.0
  %840 = vmatpush1.msra.mxu0 0.0
  %841 = vmatprep.subr.mxu0 0.0
  %842 = vmatpush1.msra.mxu0 0.0
  %843 = vmatprep.subr.mxu0 0.0
  %844 = vmatpush1.msra.mxu0 0.0
  %845 = vmatprep.subr.mxu0 0.0
  %846 = vmatpush1.msra.mxu0 0.0
  %847 = vmatprep.subr.mxu0 0.0
  %848 = vmatpush1.msra.mxu0 0.0
  %849 = vmatprep.subr.mxu0 0.0
  %850 = vmatpush1.msra.mxu0 0.0
  %851 = vmatprep.subr.mxu0 0.0
  %852 = vmatpush1.msra.mxu0 0.0
  %853 = vmatprep.subr.mxu0 0.0
  %854 = vmatpush1.msra.mxu0 0.0
  %855 = vmatprep.subr.mxu0 0.0
  %856 = vmatpush1.msra.mxu0 0.0
  %857 = vmatprep.subr.mxu0 0.0
  %858 = vmatpush1.msra.mxu0 0.0
  %859 = vmatprep.subr.mxu0 0.0
  %860 = vmatpush1.msra.mxu0 0.0
  %861 = vmatprep.subr.mxu0 0.0
  %862 = vmatpush1.msra.mxu0 0.0
  %863 = vmatprep.subr.mxu0 0.0
  %864 = vmatpush1.msra.mxu0 0.0
  %865 = vmatprep.subr.mxu0 0.0
  %866 = vmatpush1.msra.mxu0 0.0
  %867 = vmatprep.subr.mxu0 0.0
  %868 = vmatpush1.msra.mxu0 0.0
  %869 = vmatprep.subr.mxu0 0.0
  %870 = vmatpush1.msra.mxu0 0.0
  %871 = vmatprep.subr.mxu0 0.0
  %872 = vmatpush1.msra.mxu0 0.0
  %873 = vmatprep.subr.mxu0 0.0
  %874 = vmatpush1.msra.mxu0 0.0
  %875 = vmatprep.subr.mxu0 0.0
  %876 = vmatpush1.msra.mxu0 0.0
  %877 = vmatprep.subr.mxu0 0.0
  %878 = vmatpush1.msra.mxu0 0.0
  %879 = vmatprep.subr.mxu0 0.0
  %880 = vmatpush1.msra.mxu0 0.0
  %881 = vmatprep.subr.mxu0 0.0
  %882 = vmatpush1.msra.mxu0 0.0
  %883 = vmatprep.subr.mxu0 0.0
  %884 = vmatpush1.msra.mxu0 0.0
  %885 = vmatprep.subr.mxu0 0.0
  %886 = vmatpush1.msra.mxu0 0.0
  %887 = vmatprep.subr.mxu0 0.0
  %888 = vmatpush1.msra.mxu0 0.0
  %889 = vmatprep.subr.mxu0 0.0
  %890 = vmatpush1.msra.mxu0 0.0
  %891 = vmatprep.subr.mxu0 0.0
  %892 = vmatpush1.msra.mxu0 0.0
  %893 = vmatprep.subr.mxu0 0.0
  %894 = vmatpush1.msra.mxu0 0.0
  %895 = vmatprep.mubr.f32.mxu0 0.0
  %896 = vmatmul.mubr.f32.gmra.mrb[0].mxu0 %v687
  %v897 = vpop.f32.mrb[0].mxu0
  %v898 = vadd.f32 %v654, %v897
  %v899 = vpop.f32.mrb[0].mxu0
  %v900 = vadd.f32 %v656, %v899
  %901 = vdwg.mxu0
  %902 = vrot.lane.b32.xlu0 %v397, 76
  %v903 = vpop.permute.xlu0 %902
  %904 = vrot.lane.b32.xlu0 %v398, 17
  %v905 = vpop.permute.xlu0 %904
  %906 = vrot.lane.b32.xlu0 %v399, 17
  %v907 = vpop.permute.xlu0 %906
  %908 = vrot.lane.b32.xlu0 %v400, 17
  %v909 = vpop.permute.xlu0 %908
  %910 = vrot.lane.b32.xlu0 %v401, 17
  %v911 = vpop.permute.xlu0 %910
  %912 = vrot.lane.b32.xlu0 %v402, 17
  %v913 = vpop.permute.xlu0 %912
  %914 = vrot.lane.b32.xlu0 %v403, 17
  %v915 = vpop.permute.xlu0 %914
  %916 = vrot.lane.b32.xlu0 %v404, 17
  %v917 = vpop.permute.xlu0 %916
  %vm918 = vcmask 138240
  %v919 = vsel %vm918, %v905, %v907
  %v920 = vsel %vm918, %v907, %v909
  %v921 = vsel %vm918, %v909, %v911
  %v922 = vsel %vm918, %v911, %v913
  %v923 = vsel %vm918, %v913, %v915
  %v924 = vsel %vm918, %v915, %v917
  %v931 = vsel %vm442, %v903, 0
  %933 = vmatprep.subr.mxu0 %v920
  %934 = vmatpush1.msra.mxu0 %v919
  %935 = vmatprep.subr.mxu0 0.0
  %936 = vmatpush1.msra.mxu0 0.0
  %937 = vmatprep.subr.mxu0 0.0
  %938 = vmatpush1.msra.mxu0 0.0
  %939 = vmatprep.subr.mxu0 0.0
  %940 = vmatpush1.msra.mxu0 0.0
  %941 = vmatprep.subr.mxu0 0.0
  %942 = vmatpush1.msra.mxu0 0.0
  %943 = vmatprep.subr.mxu0 0.0
  %944 = vmatpush1.msra.mxu0 0.0
  %945 = vmatprep.subr.mxu0 0.0
  %946 = vmatpush1.msra.mxu0 0.0
  %947 = vmatprep.subr.mxu0 0.0
  %948 = vmatpush1.msra.mxu0 0.0
  %949 = vmatprep.subr.mxu0 0.0
  %950 = vmatpush1.msra.mxu0 0.0
  %951 = vmatprep.subr.mxu0 0.0
  %952 = vmatpush1.msra.mxu0 0.0
  %953 = vmatprep.subr.mxu0 0.0
  %954 = vmatpush1.msra.mxu0 0.0
  %955 = vmatprep.subr.mxu0 0.0
  %956 = vmatpush1.msra.mxu0 0.0
  %957 = vmatprep.subr.mxu0 0.0
  %958 = vmatpush1.msra.mxu0 0.0
  %959 = vmatprep.subr.mxu0 0.0
  %960 = vmatpush1.msra.mxu0 0.0
  %961 = vmatprep.subr.mxu0 0.0
  %962 = vmatpush1.msra.mxu0 0.0
  %963 = vmatprep.subr.mxu0 0.0
  %964 = vmatpush1.msra.mxu0 0.0
  %965 = vmatprep.subr.mxu0 0.0
  %966 = vmatpush1.msra.mxu0 0.0
  %967 = vmatprep.subr.mxu0 0.0
  %968 = vmatpush1.msra.mxu0 0.0
  %969 = vmatprep.subr.mxu0 0.0
  %970 = vmatpush1.msra.mxu0 0.0
  %971 = vmatprep.subr.mxu0 0.0
  %972 = vmatpush1.msra.mxu0 0.0
  %973 = vmatprep.subr.mxu0 0.0
  %974 = vmatpush1.msra.mxu0 0.0
  %975 = vmatprep.subr.mxu0 0.0
  %976 = vmatpush1.msra.mxu0 0.0
  %977 = vmatprep.subr.mxu0 0.0
  %978 = vmatpush1.msra.mxu0 0.0
  %979 = vmatprep.subr.mxu0 0.0
  %980 = vmatpush1.msra.mxu0 0.0
  %981 = vmatprep.subr.mxu0 0.0
  %982 = vmatpush1.msra.mxu0 0.0
  %983 = vmatprep.subr.mxu0 0.0
  %984 = vmatpush1.msra.mxu0 0.0
  %985 = vmatprep.subr.mxu0 0.0
  %986 = vmatpush1.msra.mxu0 0.0
  %987 = vmatprep.subr.mxu0 0.0
  %988 = vmatpush1.msra.mxu0 0.0
  %989 = vmatprep.subr.mxu0 0.0
  %990 = vmatpush1.msra.mxu0 0.0
  %991 = vmatprep.subr.mxu0 0.0
  %992 = vmatpush1.msra.mxu0 0.0
  %993 = vmatprep.subr.mxu0 0.0
  %994 = vmatpush1.msra.mxu0 0.0
  %995 = vmatprep.subr.mxu0 0.0
  %996 = vmatpush1.msra.mxu0 0.0
  %997 = vmatprep.mubr.f32.mxu0 0.0
  %998 = vmatmul.mubr.f32.gmra.mrb[0].mxu0 %v931
  %v999 = vpop.f32.mrb[0].mxu0
  %v1000 = vadd.f32 0.0, %v999
  %v1001 = vpop.f32.mrb[0].mxu0
  %v1002 = vadd.f32 0.0, %v1001
  %1003 = vdwg.mxu0
  %1004 = vmatprep.subr.mxu0 %v922
  %1005 = vmatpush1.msra.mxu0 %v921
  %1006 = vmatprep.subr.mxu0 0.0
  %1007 = vmatpush1.msra.mxu0 0.0
  %1008 = vmatprep.subr.mxu0 0.0
  %1009 = vmatpush1.msra.mxu0 0.0
  %1010 = vmatprep.subr.mxu0 0.0
  %1011 = vmatpush1.msra.mxu0 0.0
  %1012 = vmatprep.subr.mxu0 0.0
  %1013 = vmatpush1.msra.mxu0 0.0
  %1014 = vmatprep.subr.mxu0 0.0
  %1015 = vmatpush1.msra.mxu0 0.0
  %1016 = vmatprep.subr.mxu0 0.0
  %1017 = vmatpush1.msra.mxu0 0.0
  %1018 = vmatprep.subr.mxu0 0.0
  %1019 = vmatpush1.msra.mxu0 0.0
  %1020 = vmatprep.subr.mxu0 0.0
  %1021 = vmatpush1.msra.mxu0 0.0
  %1022 = vmatprep.subr.mxu0 0.0
  %1023 = vmatpush1.msra.mxu0 0.0
  %1024 = vmatprep.subr.mxu0 0.0
  %1025 = vmatpush1.msra.mxu0 0.0
  %1026 = vmatprep.subr.mxu0 0.0
  %1027 = vmatpush1.msra.mxu0 0.0
  %1028 = vmatprep.subr.mxu0 0.0
  %1029 = vmatpush1.msra.mxu0 0.0
  %1030 = vmatprep.subr.mxu0 0.0
  %1031 = vmatpush1.msra.mxu0 0.0
  %1032 = vmatprep.subr.mxu0 0.0
  %1033 = vmatpush1.msra.mxu0 0.0
  %1034 = vmatprep.subr.mxu0 0.0
  %1035 = vmatpush1.msra.mxu0 0.0
  %1036 = vmatprep.subr.mxu0 0.0
  %1037 = vmatpush1.msra.mxu0 0.0
  %1038 = vmatprep.subr.mxu0 0.0
  %1039 = vmatpush1.msra.mxu0 0.0
  %1040 = vmatprep.subr.mxu0 0.0
  %1041 = vmatpush1.msra.mxu0 0.0
  %1042 = vmatprep.subr.mxu0 0.0
  %1043 = vmatpush1.msra.mxu0 0.0
  %1044 = vmatprep.subr.mxu0 0.0
  %1045 = vmatpush1.msra.mxu0 0.0
  %1046 = vmatprep.subr.mxu0 0.0
  %1047 = vmatpush1.msra.mxu0 0.0
  %1048 = vmatprep.subr.mxu0 0.0
  %1049 = vmatpush1.msra.mxu0 0.0
  %1050 = vmatprep.subr.mxu0 0.0
  %1051 = vmatpush1.msra.mxu0 0.0
  %1052 = vmatprep.subr.mxu0 0.0
  %1053 = vmatpush1.msra.mxu0 0.0
  %1054 = vmatprep.subr.mxu0 0.0
  %1055 = vmatpush1.msra.mxu0 0.0
  %1056 = vmatprep.subr.mxu0 0.0
  %1057 = vmatpush1.msra.mxu0 0.0
  %1058 = vmatprep.subr.mxu0 0.0
  %1059 = vmatpush1.msra.mxu0 0.0
  %1060 = vmatprep.subr.mxu0 0.0
  %1061 = vmatpush1.msra.mxu0 0.0
  %1062 = vmatprep.subr.mxu0 0.0
  %1063 = vmatpush1.msra.mxu0 0.0
  %1064 = vmatprep.subr.mxu0 0.0
  %1065 = vmatpush1.msra.mxu0 0.0
  %1066 = vmatprep.subr.mxu0 0.0
  %1067 = vmatpush1.msra.mxu0 0.0
  %1068 = vmatprep.mubr.f32.mxu0 0.0
  %1069 = vmatmul.mubr.f32.gmra.mrb[0].mxu0 %v931
  %v1070 = vpop.f32.mrb[0].mxu0
  %v1071 = vadd.f32 0.0, %v1070
  %v1072 = vpop.f32.mrb[0].mxu0
  %v1073 = vadd.f32 0.0, %v1072
  %1074 = vdwg.mxu0
  %1075 = vmatprep.subr.mxu0 %v924
  %1076 = vmatpush1.msra.mxu0 %v923
  %1077 = vmatprep.subr.mxu0 0.0
  %1078 = vmatpush1.msra.mxu0 0.0
  %1079 = vmatprep.subr.mxu0 0.0
  %1080 = vmatpush1.msra.mxu0 0.0
  %1081 = vmatprep.subr.mxu0 0.0
  %1082 = vmatpush1.msra.mxu0 0.0
  %1083 = vmatprep.subr.mxu0 0.0
  %1084 = vmatpush1.msra.mxu0 0.0
  %1085 = vmatprep.subr.mxu0 0.0
  %1086 = vmatpush1.msra.mxu0 0.0
  %1087 = vmatprep.subr.mxu0 0.0
  %1088 = vmatpush1.msra.mxu0 0.0
  %1089 = vmatprep.subr.mxu0 0.0
  %1090 = vmatpush1.msra.mxu0 0.0
  %1091 = vmatprep.subr.mxu0 0.0
  %1092 = vmatpush1.msra.mxu0 0.0
  %1093 = vmatprep.subr.mxu0 0.0
  %1094 = vmatpush1.msra.mxu0 0.0
  %1095 = vmatprep.subr.mxu0 0.0
  %1096 = vmatpush1.msra.mxu0 0.0
  %1097 = vmatprep.subr.mxu0 0.0
  %1098 = vmatpush1.msra.mxu0 0.0
  %1099 = vmatprep.subr.mxu0 0.0
  %1100 = vmatpush1.msra.mxu0 0.0
  %1101 = vmatprep.subr.mxu0 0.0
  %1102 = vmatpush1.msra.mxu0 0.0
  %1103 = vmatprep.subr.mxu0 0.0
  %1104 = vmatpush1.msra.mxu0 0.0
  %1105 = vmatprep.subr.mxu0 0.0
  %1106 = vmatpush1.msra.mxu0 0.0
  %1107 = vmatprep.subr.mxu0 0.0
  %1108 = vmatpush1.msra.mxu0 0.0
  %1109 = vmatprep.subr.mxu0 0.0
  %1110 = vmatpush1.msra.mxu0 0.0
  %1111 = vmatprep.subr.mxu0 0.0
  %1112 = vmatpush1.msra.mxu0 0.0
  %1113 = vmatprep.subr.mxu0 0.0
  %1114 = vmatpush1.msra.mxu0 0.0
  %1115 = vmatprep.subr.mxu0 0.0
  %1116 = vmatpush1.msra.mxu0 0.0
  %1117 = vmatprep.subr.mxu0 0.0
  %1118 = vmatpush1.msra.mxu0 0.0
  %1119 = vmatprep.subr.mxu0 0.0
  %1120 = vmatpush1.msra.mxu0 0.0
  %1121 = vmatprep.subr.mxu0 0.0
  %1122 = vmatpush1.msra.mxu0 0.0
  %1123 = vmatprep.subr.mxu0 0.0
  %1124 = vmatpush1.msra.mxu0 0.0
  %1125 = vmatprep.subr.mxu0 0.0
  %1126 = vmatpush1.msra.mxu0 0.0
  %1127 = vmatprep.subr.mxu0 0.0
  %1128 = vmatpush1.msra.mxu0 0.0
  %1129 = vmatprep.subr.mxu0 0.0
  %1130 = vmatpush1.msra.mxu0 0.0
  %1131 = vmatprep.subr.mxu0 0.0
  %1132 = vmatpush1.msra.mxu0 0.0
  %1133 = vmatprep.subr.mxu0 0.0
  %1134 = vmatpush1.msra.mxu0 0.0
  %1135 = vmatprep.subr.mxu0 0.0
  %1136 = vmatpush1.msra.mxu0 0.0
  %1137 = vmatprep.subr.mxu0 0.0
  %1138 = vmatpush1.msra.mxu0 0.0
  %1139 = vmatprep.mubr.f32.mxu0 0.0
  %1140 = vmatmul.mubr.f32.gmra.mrb[0].mxu0 %v931
  %v1141 = vpop.f32.mrb[0].mxu0
  %v1142 = vadd.f32 0.0, %v1141
  %v1143 = vpop.f32.mrb[0].mxu0
  %v1144 = vadd.f32 0.0, %v1143
  %1145 = vdwg.mxu0
  %v1146 = vadd.f32 %v756, %v1000
  %v1147 = vadd.f32 %v758, %v1002
  %v1148 = vadd.f32 %v827, %v1071
  %v1149 = vadd.f32 %v829, %v1073
  %v1150 = vadd.f32 %v898, %v1142
  %v1151 = vadd.f32 %v900, %v1144
  %1152 = vrot.lane.b32.xlu0 %v397, 68
  %v1153 = vpop.permute.xlu0 %1152
  %1154 = vrot.lane.b32.xlu0 %v398, 1
  %v1155 = vpop.permute.xlu0 %1154
  %1156 = vrot.lane.b32.xlu0 %v399, 1
  %v1157 = vpop.permute.xlu0 %1156
  %1158 = vrot.lane.b32.xlu0 %v400, 1
  %v1159 = vpop.permute.xlu0 %1158
  %1160 = vrot.lane.b32.xlu0 %v401, 1
  %v1161 = vpop.permute.xlu0 %1160
  %1162 = vrot.lane.b32.xlu0 %v402, 1
  %v1163 = vpop.permute.xlu0 %1162
  %1164 = vrot.lane.b32.xlu0 %v403, 1
  %v1165 = vpop.permute.xlu0 %1164
  %1166 = vrot.lane.b32.xlu0 %v404, 1
  %v1167 = vpop.permute.xlu0 %1166
  %vm1168 = vcmask 7168
  %v1169 = vsel %vm1168, %v1155, %v1157
  %v1170 = vsel %vm1168, %v1157, %v1159
  %v1171 = vsel %vm1168, %v1159, %v1161
  %v1172 = vsel %vm1168, %v1161, %v1163
  %v1173 = vsel %vm1168, %v1163, %v1165
  %v1174 = vsel %vm1168, %v1165, %v1167
  %v1181 = vsel %vm442, %v1153, 0
  %1183 = vmatprep.subr.mxu0 %v1170
  %1184 = vmatpush1.msra.mxu0 %v1169
  %1185 = vmatprep.subr.mxu0 0.0
  %1186 = vmatpush1.msra.mxu0 0.0
  %1187 = vmatprep.subr.mxu0 0.0
  %1188 = vmatpush1.msra.mxu0 0.0
  %1189 = vmatprep.subr.mxu0 0.0
  %1190 = vmatpush1.msra.mxu0 0.0
  %1191 = vmatprep.subr.mxu0 0.0
  %1192 = vmatpush1.msra.mxu0 0.0
  %1193 = vmatprep.subr.mxu0 0.0
  %1194 = vmatpush1.msra.mxu0 0.0
  %1195 = vmatprep.subr.mxu0 0.0
  %1196 = vmatpush1.msra.mxu0 0.0
  %1197 = vmatprep.subr.mxu0 0.0
  %1198 = vmatpush1.msra.mxu0 0.0
  %1199 = vmatprep.subr.mxu0 0.0
  %1200 = vmatpush1.msra.mxu0 0.0
  %1201 = vmatprep.subr.mxu0 0.0
  %1202 = vmatpush1.msra.mxu0 0.0
  %1203 = vmatprep.subr.mxu0 0.0
  %1204 = vmatpush1.msra.mxu0 0.0
  %1205 = vmatprep.subr.mxu0 0.0
  %1206 = vmatpush1.msra.mxu0 0.0
  %1207 = vmatprep.subr.mxu0 0.0
  %1208 = vmatpush1.msra.mxu0 0.0
  %1209 = vmatprep.subr.mxu0 0.0
  %1210 = vmatpush1.msra.mxu0 0.0
  %1211 = vmatprep.subr.mxu0 0.0
  %1212 = vmatpush1.msra.mxu0 0.0
  %1213 = vmatprep.subr.mxu0 0.0
  %1214 = vmatpush1.msra.mxu0 0.0
  %1215 = vmatprep.subr.mxu0 0.0
  %1216 = vmatpush1.msra.mxu0 0.0
  %1217 = vmatprep.subr.mxu0 0.0
  %1218 = vmatpush1.msra.mxu0 0.0
  %1219 = vmatprep.subr.mxu0 0.0
  %1220 = vmatpush1.msra.mxu0 0.0
  %1221 = vmatprep.subr.mxu0 0.0
  %1222 = vmatpush1.msra.mxu0 0.0
  %1223 = vmatprep.subr.mxu0 0.0
  %1224 = vmatpush1.msra.mxu0 0.0
  %1225 = vmatprep.subr.mxu0 0.0
  %1226 = vmatpush1.msra.mxu0 0.0
  %1227 = vmatprep.subr.mxu0 0.0
  %1228 = vmatpush1.msra.mxu0 0.0
  %1229 = vmatprep.subr.mxu0 0.0
  %1230 = vmatpush1.msra.mxu0 0.0
  %1231 = vmatprep.subr.mxu0 0.0
  %1232 = vmatpush1.msra.mxu0 0.0
  %1233 = vmatprep.subr.mxu0 0.0
  %1234 = vmatpush1.msra.mxu0 0.0
  %1235 = vmatprep.subr.mxu0 0.0
  %1236 = vmatpush1.msra.mxu0 0.0
  %1237 = vmatprep.subr.mxu0 0.0
  %1238 = vmatpush1.msra.mxu0 0.0
  %1239 = vmatprep.subr.mxu0 0.0
  %1240 = vmatpush1.msra.mxu0 0.0
  %1241 = vmatprep.subr.mxu0 0.0
  %1242 = vmatpush1.msra.mxu0 0.0
  %1243 = vmatprep.subr.mxu0 0.0
  %1244 = vmatpush1.msra.mxu0 0.0
  %1245 = vmatprep.subr.mxu0 0.0
  %1246 = vmatpush1.msra.mxu0 0.0
  %1247 = vmatprep.mubr.f32.mxu0 0.0
  %1248 = vmatmul.mubr.f32.gmra.mrb[0].mxu0 %v1181
  %v1249 = vpop.f32.mrb[0].mxu0
  %v1250 = vadd.f32 0.0, %v1249
  %v1251 = vpop.f32.mrb[0].mxu0
  %v1252 = vadd.f32 0.0, %v1251
  %1253 = vdwg.mxu0
  %1254 = vmatprep.subr.mxu0 %v1172
  %1255 = vmatpush1.msra.mxu0 %v1171
  %1256 = vmatprep.subr.mxu0 0.0
  %1257 = vmatpush1.msra.mxu0 0.0
  %1258 = vmatprep.subr.mxu0 0.0
  %1259 = vmatpush1.msra.mxu0 0.0
  %1260 = vmatprep.subr.mxu0 0.0
  %1261 = vmatpush1.msra.mxu0 0.0
  %1262 = vmatprep.subr.mxu0 0.0
  %1263 = vmatpush1.msra.mxu0 0.0
  %1264 = vmatprep.subr.mxu0 0.0
  %1265 = vmatpush1.msra.mxu0 0.0
  %1266 = vmatprep.subr.mxu0 0.0
  %1267 = vmatpush1.msra.mxu0 0.0
  %1268 = vmatprep.subr.mxu0 0.0
  %1269 = vmatpush1.msra.mxu0 0.0
  %1270 = vmatprep.subr.mxu0 0.0
  %1271 = vmatpush1.msra.mxu0 0.0
  %1272 = vmatprep.subr.mxu0 0.0
  %1273 = vmatpush1.msra.mxu0 0.0
  %1274 = vmatprep.subr.mxu0 0.0
  %1275 = vmatpush1.msra.mxu0 0.0
  %1276 = vmatprep.subr.mxu0 0.0
  %1277 = vmatpush1.msra.mxu0 0.0
  %1278 = vmatprep.subr.mxu0 0.0
  %1279 = vmatpush1.msra.mxu0 0.0
  %1280 = vmatprep.subr.mxu0 0.0
  %1281 = vmatpush1.msra.mxu0 0.0
  %1282 = vmatprep.subr.mxu0 0.0
  %1283 = vmatpush1.msra.mxu0 0.0
  %1284 = vmatprep.subr.mxu0 0.0
  %1285 = vmatpush1.msra.mxu0 0.0
  %1286 = vmatprep.subr.mxu0 0.0
  %1287 = vmatpush1.msra.mxu0 0.0
  %1288 = vmatprep.subr.mxu0 0.0
  %1289 = vmatpush1.msra.mxu0 0.0
  %1290 = vmatprep.subr.mxu0 0.0
  %1291 = vmatpush1.msra.mxu0 0.0
  %1292 = vmatprep.subr.mxu0 0.0
  %1293 = vmatpush1.msra.mxu0 0.0
  %1294 = vmatprep.subr.mxu0 0.0
  %1295 = vmatpush1.msra.mxu0 0.0
  %1296 = vmatprep.subr.mxu0 0.0
  %1297 = vmatpush1.msra.mxu0 0.0
  %1298 = vmatprep.subr.mxu0 0.0
  %1299 = vmatpush1.msra.mxu0 0.0
  %1300 = vmatprep.subr.mxu0 0.0
  %1301 = vmatpush1.msra.mxu0 0.0
  %1302 = vmatprep.subr.mxu0 0.0
  %1303 = vmatpush1.msra.mxu0 0.0
  %1304 = vmatprep.subr.mxu0 0.0
  %1305 = vmatpush1.msra.mxu0 0.0
  %1306 = vmatprep.subr.mxu0 0.0
  %1307 = vmatpush1.msra.mxu0 0.0
  %1308 = vmatprep.subr.mxu0 0.0
  %1309 = vmatpush1.msra.mxu0 0.0
  %1310 = vmatprep.subr.mxu0 0.0
  %1311 = vmatpush1.msra.mxu0 0.0
  %1312 = vmatprep.subr.mxu0 0.0
  %1313 = vmatpush1.msra.mxu0 0.0
  %1314 = vmatprep.subr.mxu0 0.0
  %1315 = vmatpush1.msra.mxu0 0.0
  %1316 = vmatprep.subr.mxu0 0.0
  %1317 = vmatpush1.msra.mxu0 0.0
  %1318 = vmatprep.mubr.f32.mxu0 0.0
  %1319 = vmatmul.mubr.f32.gmra.mrb[0].mxu0 %v1181
  %v1320 = vpop.f32.mrb[0].mxu0
  %v1321 = vadd.f32 0.0, %v1320
  %v1322 = vpop.f32.mrb[0].mxu0
  %v1323 = vadd.f32 0.0, %v1322
  %1324 = vdwg.mxu0
  %1325 = vmatprep.subr.mxu0 %v1174
  %1326 = vmatpush1.msra.mxu0 %v1173
  %1327 = vmatprep.subr.mxu0 0.0
  %1328 = vmatpush1.msra.mxu0 0.0
  %1329 = vmatprep.subr.mxu0 0.0
  %1330 = vmatpush1.msra.mxu0 0.0
  %1331 = vmatprep.subr.mxu0 0.0
  %1332 = vmatpush1.msra.mxu0 0.0
  %1333 = vmatprep.subr.mxu0 0.0
  %1334 = vmatpush1.msra.mxu0 0.0
  %1335 = vmatprep.subr.mxu0 0.0
  %1336 = vmatpush1.msra.mxu0 0.0
  %1337 = vmatprep.subr.mxu0 0.0
  %1338 = vmatpush1.msra.mxu0 0.0
  %1339 = vmatprep.subr.mxu0 0.0
  %1340 = vmatpush1.msra.mxu0 0.0
  %1341 = vmatprep.subr.mxu0 0.0
  %1342 = vmatpush1.msra.mxu0 0.0
  %1343 = vmatprep.subr.mxu0 0.0
  %1344 = vmatpush1.msra.mxu0 0.0
  %1345 = vmatprep.subr.mxu0 0.0
  %1346 = vmatpush1.msra.mxu0 0.0
  %1347 = vmatprep.subr.mxu0 0.0
  %1348 = vmatpush1.msra.mxu0 0.0
  %1349 = vmatprep.subr.mxu0 0.0
  %1350 = vmatpush1.msra.mxu0 0.0
  %1351 = vmatprep.subr.mxu0 0.0
  %1352 = vmatpush1.msra.mxu0 0.0
  %1353 = vmatprep.subr.mxu0 0.0
  %1354 = vmatpush1.msra.mxu0 0.0
  %1355 = vmatprep.subr.mxu0 0.0
  %1356 = vmatpush1.msra.mxu0 0.0
  %1357 = vmatprep.subr.mxu0 0.0
  %1358 = vmatpush1.msra.mxu0 0.0
  %1359 = vmatprep.subr.mxu0 0.0
  %1360 = vmatpush1.msra.mxu0 0.0
  %1361 = vmatprep.subr.mxu0 0.0
  %1362 = vmatpush1.msra.mxu0 0.0
  %1363 = vmatprep.subr.mxu0 0.0
  %1364 = vmatpush1.msra.mxu0 0.0
  %1365 = vmatprep.subr.mxu0 0.0
  %1366 = vmatpush1.msra.mxu0 0.0
  %1367 = vmatprep.subr.mxu0 0.0
  %1368 = vmatpush1.msra.mxu0 0.0
  %1369 = vmatprep.subr.mxu0 0.0
  %1370 = vmatpush1.msra.mxu0 0.0
  %1371 = vmatprep.subr.mxu0 0.0
  %1372 = vmatpush1.msra.mxu0 0.0
  %1373 = vmatprep.subr.mxu0 0.0
  %1374 = vmatpush1.msra.mxu0 0.0
  %1375 = vmatprep.subr.mxu0 0.0
  %1376 = vmatpush1.msra.mxu0 0.0
  %1377 = vmatprep.subr.mxu0 0.0
  %1378 = vmatpush1.msra.mxu0 0.0
  %1379 = vmatprep.subr.mxu0 0.0
  %1380 = vmatpush1.msra.mxu0 0.0
  %1381 = vmatprep.subr.mxu0 0.0
  %1382 = vmatpush1.msra.mxu0 0.0
  %1383 = vmatprep.subr.mxu0 0.0
  %1384 = vmatpush1.msra.mxu0 0.0
  %1385 = vmatprep.subr.mxu0 0.0
  %1386 = vmatpush1.msra.mxu0 0.0
  %1387 = vmatprep.subr.mxu0 0.0
  %1388 = vmatpush1.msra.mxu0 0.0
  %1389 = vmatprep.mubr.f32.mxu0 0.0
  %1390 = vmatmul.mubr.f32.gmra.mrb[0].mxu0 %v1181
  %v1391 = vpop.f32.mrb[0].mxu0
  %v1392 = vadd.f32 0.0, %v1391
  %v1393 = vpop.f32.mrb[0].mxu0
  %v1394 = vadd.f32 0.0, %v1393
  %1395 = vdwg.mxu0
  %v1396 = vadd.f32 %v1146, %v1250
  %v1397 = vadd.f32 %v1147, %v1252
  %v1398 = vadd.f32 %v1148, %v1321
  %v1399 = vadd.f32 %v1149, %v1323
  %v1400 = vadd.f32 %v1150, %v1392
  %v1401 = vadd.f32 %v1151, %v1394
  %1402 = vrot.lane.b32.xlu0 %v397, 60
  %v1403 = vpop.permute.xlu0 %1402
  %v1404 = vsel %vm442, %v1403, 0
  %1406 = vmatprep.subr.mxu0 %v400
  %1407 = vmatpush1.msra.mxu0 %v399
  %1408 = vmatprep.subr.mxu0 0.0
  %1409 = vmatpush1.msra.mxu0 0.0
  %1410 = vmatprep.subr.mxu0 0.0
  %1411 = vmatpush1.msra.mxu0 0.0
  %1412 = vmatprep.subr.mxu0 0.0
  %1413 = vmatpush1.msra.mxu0 0.0
  %1414 = vmatprep.subr.mxu0 0.0
  %1415 = vmatpush1.msra.mxu0 0.0
  %1416 = vmatprep.subr.mxu0 0.0
  %1417 = vmatpush1.msra.mxu0 0.0
  %1418 = vmatprep.subr.mxu0 0.0
  %1419 = vmatpush1.msra.mxu0 0.0
  %1420 = vmatprep.subr.mxu0 0.0
  %1421 = vmatpush1.msra.mxu0 0.0
  %1422 = vmatprep.subr.mxu0 0.0
  %1423 = vmatpush1.msra.mxu0 0.0
  %1424 = vmatprep.subr.mxu0 0.0
  %1425 = vmatpush1.msra.mxu0 0.0
  %1426 = vmatprep.subr.mxu0 0.0
  %1427 = vmatpush1.msra.mxu0 0.0
  %1428 = vmatprep.subr.mxu0 0.0
  %1429 = vmatpush1.msra.mxu0 0.0
  %1430 = vmatprep.subr.mxu0 0.0
  %1431 = vmatpush1.msra.mxu0 0.0
  %1432 = vmatprep.subr.mxu0 0.0
  %1433 = vmatpush1.msra.mxu0 0.0
  %1434 = vmatprep.subr.mxu0 0.0
  %1435 = vmatpush1.msra.mxu0 0.0
  %1436 = vmatprep.subr.mxu0 0.0
  %1437 = vmatpush1.msra.mxu0 0.0
  %1438 = vmatprep.subr.mxu0 0.0
  %1439 = vmatpush1.msra.mxu0 0.0
  %1440 = vmatprep.subr.mxu0 0.0
  %1441 = vmatpush1.msra.mxu0 0.0
  %1442 = vmatprep.subr.mxu0 0.0
  %1443 = vmatpush1.msra.mxu0 0.0
  %1444 = vmatprep.subr.mxu0 0.0
  %1445 = vmatpush1.msra.mxu0 0.0
  %1446 = vmatprep.subr.mxu0 0.0
  %1447 = vmatpush1.msra.mxu0 0.0
  %1448 = vmatprep.subr.mxu0 0.0
  %1449 = vmatpush1.msra.mxu0 0.0
  %1450 = vmatprep.subr.mxu0 0.0
  %1451 = vmatpush1.msra.mxu0 0.0
  %1452 = vmatprep.subr.mxu0 0.0
  %1453 = vmatpush1.msra.mxu0 0.0
  %1454 = vmatprep.subr.mxu0 0.0
  %1455 = vmatpush1.msra.mxu0 0.0
  %1456 = vmatprep.subr.mxu0 0.0
  %1457 = vmatpush1.msra.mxu0 0.0
  %1458 = vmatprep.subr.mxu0 0.0
  %1459 = vmatpush1.msra.mxu0 0.0
  %1460 = vmatprep.subr.mxu0 0.0
  %1461 = vmatpush1.msra.mxu0 0.0
  %1462 = vmatprep.subr.mxu0 0.0
  %1463 = vmatpush1.msra.mxu0 0.0
  %1464 = vmatprep.subr.mxu0 0.0
  %1465 = vmatpush1.msra.mxu0 0.0
  %1466 = vmatprep.subr.mxu0 0.0
  %1467 = vmatpush1.msra.mxu0 0.0
  %1468 = vmatprep.subr.mxu0 0.0
  %1469 = vmatpush1.msra.mxu0 0.0
  %1470 = vmatprep.mubr.f32.mxu0 0.0
  %1471 = vmatmul.mubr.f32.gmra.mrb[0].mxu0 %v1404
  %v1472 = vpop.f32.mrb[0].mxu0
  %v1473 = vadd.f32 0.0, %v1472
  %v1474 = vpop.f32.mrb[0].mxu0
  %v1475 = vadd.f32 0.0, %v1474
  %1476 = vdwg.mxu0
  %1477 = vmatprep.subr.mxu0 %v402
  %1478 = vmatpush1.msra.mxu0 %v401
  %1479 = vmatprep.subr.mxu0 0.0
  %1480 = vmatpush1.msra.mxu0 0.0
  %1481 = vmatprep.subr.mxu0 0.0
  %1482 = vmatpush1.msra.mxu0 0.0
  %1483 = vmatprep.subr.mxu0 0.0
  %1484 = vmatpush1.msra.mxu0 0.0
  %1485 = vmatprep.subr.mxu0 0.0
  %1486 = vmatpush1.msra.mxu0 0.0
  %1487 = vmatprep.subr.mxu0 0.0
  %1488 = vmatpush1.msra.mxu0 0.0
  %1489 = vmatprep.subr.mxu0 0.0
  %1490 = vmatpush1.msra.mxu0 0.0
  %1491 = vmatprep.subr.mxu0 0.0
  %1492 = vmatpush1.msra.mxu0 0.0
  %1493 = vmatprep.subr.mxu0 0.0
  %1494 = vmatpush1.msra.mxu0 0.0
  %1495 = vmatprep.subr.mxu0 0.0
  %1496 = vmatpush1.msra.mxu0 0.0
  %1497 = vmatprep.subr.mxu0 0.0
  %1498 = vmatpush1.msra.mxu0 0.0
  %1499 = vmatprep.subr.mxu0 0.0
  %1500 = vmatpush1.msra.mxu0 0.0
  %1501 = vmatprep.subr.mxu0 0.0
  %1502 = vmatpush1.msra.mxu0 0.0
  %1503 = vmatprep.subr.mxu0 0.0
  %1504 = vmatpush1.msra.mxu0 0.0
  %1505 = vmatprep.subr.mxu0 0.0
  %1506 = vmatpush1.msra.mxu0 0.0
  %1507 = vmatprep.subr.mxu0 0.0
  %1508 = vmatpush1.msra.mxu0 0.0
  %1509 = vmatprep.subr.mxu0 0.0
  %1510 = vmatpush1.msra.mxu0 0.0
  %1511 = vmatprep.subr.mxu0 0.0
  %1512 = vmatpush1.msra.mxu0 0.0
  %1513 = vmatprep.subr.mxu0 0.0
  %1514 = vmatpush1.msra.mxu0 0.0
  %1515 = vmatprep.subr.mxu0 0.0
  %1516 = vmatpush1.msra.mxu0 0.0
  %1517 = vmatprep.subr.mxu0 0.0
  %1518 = vmatpush1.msra.mxu0 0.0
  %1519 = vmatprep.subr.mxu0 0.0
  %1520 = vmatpush1.msra.mxu0 0.0
  %1521 = vmatprep.subr.mxu0 0.0
  %1522 = vmatpush1.msra.mxu0 0.0
  %1523 = vmatprep.subr.mxu0 0.0
  %1524 = vmatpush1.msra.mxu0 0.0
  %1525 = vmatprep.subr.mxu0 0.0
  %1526 = vmatpush1.msra.mxu0 0.0
  %1527 = vmatprep.subr.mxu0 0.0
  %1528 = vmatpush1.msra.mxu0 0.0
  %1529 = vmatprep.subr.mxu0 0.0
  %1530 = vmatpush1.msra.mxu0 0.0
  %1531 = vmatprep.subr.mxu0 0.0
  %1532 = vmatpush1.msra.mxu0 0.0
  %1533 = vmatprep.subr.mxu0 0.0
  %1534 = vmatpush1.msra.mxu0 0.0
  %1535 = vmatprep.subr.mxu0 0.0
  %1536 = vmatpush1.msra.mxu0 0.0
  %1537 = vmatprep.subr.mxu0 0.0
  %1538 = vmatpush1.msra.mxu0 0.0
  %1539 = vmatprep.subr.mxu0 0.0
  %1540 = vmatpush1.msra.mxu0 0.0
  %1541 = vmatprep.mubr.f32.mxu0 0.0
  %1542 = vmatmul.mubr.f32.gmra.mrb[0].mxu0 %v1404
  %v1543 = vpop.f32.mrb[0].mxu0
  %v1544 = vadd.f32 0.0, %v1543
  %v1545 = vpop.f32.mrb[0].mxu0
  %v1546 = vadd.f32 0.0, %v1545
  %1547 = vdwg.mxu0
  %1548 = vmatprep.subr.mxu0 %v404
  %1549 = vmatpush1.msra.mxu0 %v403
  %1550 = vmatprep.subr.mxu0 0.0
  %1551 = vmatpush1.msra.mxu0 0.0
  %1552 = vmatprep.subr.mxu0 0.0
  %1553 = vmatpush1.msra.mxu0 0.0
  %1554 = vmatprep.subr.mxu0 0.0
  %1555 = vmatpush1.msra.mxu0 0.0
  %1556 = vmatprep.subr.mxu0 0.0
  %1557 = vmatpush1.msra.mxu0 0.0
  %1558 = vmatprep.subr.mxu0 0.0
  %1559 = vmatpush1.msra.mxu0 0.0
  %1560 = vmatprep.subr.mxu0 0.0
  %1561 = vmatpush1.msra.mxu0 0.0
  %1562 = vmatprep.subr.mxu0 0.0
  %1563 = vmatpush1.msra.mxu0 0.0
  %1564 = vmatprep.subr.mxu0 0.0
  %1565 = vmatpush1.msra.mxu0 0.0
  %1566 = vmatprep.subr.mxu0 0.0
  %1567 = vmatpush1.msra.mxu0 0.0
  %1568 = vmatprep.subr.mxu0 0.0
  %1569 = vmatpush1.msra.mxu0 0.0
  %1570 = vmatprep.subr.mxu0 0.0
  %1571 = vmatpush1.msra.mxu0 0.0
  %1572 = vmatprep.subr.mxu0 0.0
  %1573 = vmatpush1.msra.mxu0 0.0
  %1574 = vmatprep.subr.mxu0 0.0
  %1575 = vmatpush1.msra.mxu0 0.0
  %1576 = vmatprep.subr.mxu0 0.0
  %1577 = vmatpush1.msra.mxu0 0.0
  %1578 = vmatprep.subr.mxu0 0.0
  %1579 = vmatpush1.msra.mxu0 0.0
  %1580 = vmatprep.subr.mxu0 0.0
  %1581 = vmatpush1.msra.mxu0 0.0
  %1582 = vmatprep.subr.mxu0 0.0
  %1583 = vmatpush1.msra.mxu0 0.0
  %1584 = vmatprep.subr.mxu0 0.0
  %1585 = vmatpush1.msra.mxu0 0.0
  %1586 = vmatprep.subr.mxu0 0.0
  %1587 = vmatpush1.msra.mxu0 0.0
  %1588 = vmatprep.subr.mxu0 0.0
  %1589 = vmatpush1.msra.mxu0 0.0
  %1590 = vmatprep.subr.mxu0 0.0
  %1591 = vmatpush1.msra.mxu0 0.0
  %1592 = vmatprep.subr.mxu0 0.0
  %1593 = vmatpush1.msra.mxu0 0.0
  %1594 = vmatprep.subr.mxu0 0.0
  %1595 = vmatpush1.msra.mxu0 0.0
  %1596 = vmatprep.subr.mxu0 0.0
  %1597 = vmatpush1.msra.mxu0 0.0
  %1598 = vmatprep.subr.mxu0 0.0
  %1599 = vmatpush1.msra.mxu0 0.0
  %1600 = vmatprep.subr.mxu0 0.0
  %1601 = vmatpush1.msra.mxu0 0.0
  %1602 = vmatprep.subr.mxu0 0.0
  %1603 = vmatpush1.msra.mxu0 0.0
  %1604 = vmatprep.subr.mxu0 0.0
  %1605 = vmatpush1.msra.mxu0 0.0
  %1606 = vmatprep.subr.mxu0 0.0
  %1607 = vmatpush1.msra.mxu0 0.0
  %1608 = vmatprep.subr.mxu0 0.0
  %1609 = vmatpush1.msra.mxu0 0.0
  %1610 = vmatprep.subr.mxu0 0.0
  %1611 = vmatpush1.msra.mxu0 0.0
  %1612 = vmatprep.mubr.f32.mxu0 0.0
  %1613 = vmatmul.mubr.f32.gmra.mrb[0].mxu0 %v1404
  %v1614 = vpop.f32.mrb[0].mxu0
  %v1615 = vadd.f32 0.0, %v1614
  %v1616 = vpop.f32.mrb[0].mxu0
  %v1617 = vadd.f32 0.0, %v1616
  %1618 = vdwg.mxu0
  %v1619 = vadd.f32 %v1396, %v1473
  %v1620 = vadd.f32 %v1397, %v1475
  %v1621 = vadd.f32 %v1398, %v1544
  %v1622 = vadd.f32 %v1399, %v1546
  %v1623 = vadd.f32 %v1400, %v1615
  %v1624 = vadd.f32 %v1401, %v1617
  %v1625 = vld [vmem:[#allocation2 + $0x8] sm:$0xff]
  %v1626 = vld [vmem:[#allocation2 + $0x10] sm:$0xff]
  %v1627 = vld [vmem:[#allocation2 + $0x18] sm:$0xff]
  %v1628 = vld [vmem:[#allocation2 + $0x20] sm:$0xff]
  %v1629 = vld [vmem:[#allocation2 + $0x28] sm:$0xff]
  %v1630 = vld [vmem:[#allocation2 + $0x30] sm:$0xff]
  %v1631 = vld [vmem:[#allocation2 + $0x38] sm:$0xff]
  %1632 = vrot.lane.b32.xlu0 %v397, 52
  %v1633 = vpop.permute.xlu0 %1632
  %1641 = vrot.lane.b32.xlu0 %v1625, 127
  %v1642 = vpop.permute.xlu0 %1641
  %1643 = vrot.lane.b32.xlu0 %v1626, 127
  %v1644 = vpop.permute.xlu0 %1643
  %1645 = vrot.lane.b32.xlu0 %v1627, 127
  %v1646 = vpop.permute.xlu0 %1645
  %1647 = vrot.lane.b32.xlu0 %v1628, 127
  %v1648 = vpop.permute.xlu0 %1647
  %1649 = vrot.lane.b32.xlu0 %v1629, 127
  %v1650 = vpop.permute.xlu0 %1649
  %1651 = vrot.lane.b32.xlu0 %v1630, 127
  %v1652 = vpop.permute.xlu0 %1651
  %1653 = vrot.lane.b32.xlu0 %v1631, 127
  %v1654 = vpop.permute.xlu0 %1653
  %vm1655 = vcmask 1039360
  %v1656 = vsel %vm1655, %v1642, %v1644
  %v1657 = vsel %vm1655, %v1644, %v1646
  %v1658 = vsel %vm1655, %v1646, %v1648
  %v1659 = vsel %vm1655, %v1648, %v1650
  %v1660 = vsel %vm1655, %v1650, %v1652
  %v1661 = vsel %vm1655, %v1652, %v1654
  %v1668 = vsel %vm442, %v1633, 0
  %1670 = vmatprep.subr.mxu0 %v1657
  %1671 = vmatpush1.msra.mxu0 %v1656
  %1672 = vmatprep.subr.mxu0 0.0
  %1673 = vmatpush1.msra.mxu0 0.0
  %1674 = vmatprep.subr.mxu0 0.0
  %1675 = vmatpush1.msra.mxu0 0.0
  %1676 = vmatprep.subr.mxu0 0.0
  %1677 = vmatpush1.msra.mxu0 0.0
  %1678 = vmatprep.subr.mxu0 0.0
  %1679 = vmatpush1.msra.mxu0 0.0
  %1680 = vmatprep.subr.mxu0 0.0
  %1681 = vmatpush1.msra.mxu0 0.0
  %1682 = vmatprep.subr.mxu0 0.0
  %1683 = vmatpush1.msra.mxu0 0.0
  %1684 = vmatprep.subr.mxu0 0.0
  %1685 = vmatpush1.msra.mxu0 0.0
  %1686 = vmatprep.subr.mxu0 0.0
  %1687 = vmatpush1.msra.mxu0 0.0
  %1688 = vmatprep.subr.mxu0 0.0
  %1689 = vmatpush1.msra.mxu0 0.0
  %1690 = vmatprep.subr.mxu0 0.0
  %1691 = vmatpush1.msra.mxu0 0.0
  %1692 = vmatprep.subr.mxu0 0.0
  %1693 = vmatpush1.msra.mxu0 0.0
  %1694 = vmatprep.subr.mxu0 0.0
  %1695 = vmatpush1.msra.mxu0 0.0
  %1696 = vmatprep.subr.mxu0 0.0
  %1697 = vmatpush1.msra.mxu0 0.0
  %1698 = vmatprep.subr.mxu0 0.0
  %1699 = vmatpush1.msra.mxu0 0.0
  %1700 = vmatprep.subr.mxu0 0.0
  %1701 = vmatpush1.msra.mxu0 0.0
  %1702 = vmatprep.subr.mxu0 0.0
  %1703 = vmatpush1.msra.mxu0 0.0
  %1704 = vmatprep.subr.mxu0 0.0
  %1705 = vmatpush1.msra.mxu0 0.0
  %1706 = vmatprep.subr.mxu0 0.0
  %1707 = vmatpush1.msra.mxu0 0.0
  %1708 = vmatprep.subr.mxu0 0.0
  %1709 = vmatpush1.msra.mxu0 0.0
  %1710 = vmatprep.subr.mxu0 0.0
  %1711 = vmatpush1.msra.mxu0 0.0
  %1712 = vmatprep.subr.mxu0 0.0
  %1713 = vmatpush1.msra.mxu0 0.0
  %1714 = vmatprep.subr.mxu0 0.0
  %1715 = vmatpush1.msra.mxu0 0.0
  %1716 = vmatprep.subr.mxu0 0.0
  %1717 = vmatpush1.msra.mxu0 0.0
  %1718 = vmatprep.subr.mxu0 0.0
  %1719 = vmatpush1.msra.mxu0 0.0
  %1720 = vmatprep.subr.mxu0 0.0
  %1721 = vmatpush1.msra.mxu0 0.0
  %1722 = vmatprep.subr.mxu0 0.0
  %1723 = vmatpush1.msra.mxu0 0.0
  %1724 = vmatprep.subr.mxu0 0.0
  %1725 = vmatpush1.msra.mxu0 0.0
  %1726 = vmatprep.subr.mxu0 0.0
  %1727 = vmatpush1.msra.mxu0 0.0
  %1728 = vmatprep.subr.mxu0 0.0
  %1729 = vmatpush1.msra.mxu0 0.0
  %1730 = vmatprep.subr.mxu0 0.0
  %1731 = vmatpush1.msra.mxu0 0.0
  %1732 = vmatprep.subr.mxu0 0.0
  %1733 = vmatpush1.msra.mxu0 0.0
  %1734 = vmatprep.mubr.f32.mxu0 0.0
  %1735 = vmatmul.mubr.f32.gmra.mrb[0].mxu0 %v1668
  %v1736 = vpop.f32.mrb[0].mxu0
  %v1737 = vadd.f32 0.0, %v1736
  %v1738 = vpop.f32.mrb[0].mxu0
  %v1739 = vadd.f32 0.0, %v1738
  %1740 = vdwg.mxu0
  %1741 = vmatprep.subr.mxu0 %v1659
  %1742 = vmatpush1.msra.mxu0 %v1658
  %1743 = vmatprep.subr.mxu0 0.0
  %1744 = vmatpush1.msra.mxu0 0.0
  %1745 = vmatprep.subr.mxu0 0.0
  %1746 = vmatpush1.msra.mxu0 0.0
  %1747 = vmatprep.subr.mxu0 0.0
  %1748 = vmatpush1.msra.mxu0 0.0
  %1749 = vmatprep.subr.mxu0 0.0
  %1750 = vmatpush1.msra.mxu0 0.0
  %1751 = vmatprep.subr.mxu0 0.0
  %1752 = vmatpush1.msra.mxu0 0.0
  %1753 = vmatprep.subr.mxu0 0.0
  %1754 = vmatpush1.msra.mxu0 0.0
  %1755 = vmatprep.subr.mxu0 0.0
  %1756 = vmatpush1.msra.mxu0 0.0
  %1757 = vmatprep.subr.mxu0 0.0
  %1758 = vmatpush1.msra.mxu0 0.0
  %1759 = vmatprep.subr.mxu0 0.0
  %1760 = vmatpush1.msra.mxu0 0.0
  %1761 = vmatprep.subr.mxu0 0.0
  %1762 = vmatpush1.msra.mxu0 0.0
  %1763 = vmatprep.subr.mxu0 0.0
  %1764 = vmatpush1.msra.mxu0 0.0
  %1765 = vmatprep.subr.mxu0 0.0
  %1766 = vmatpush1.msra.mxu0 0.0
  %1767 = vmatprep.subr.mxu0 0.0
  %1768 = vmatpush1.msra.mxu0 0.0
  %1769 = vmatprep.subr.mxu0 0.0
  %1770 = vmatpush1.msra.mxu0 0.0
  %1771 = vmatprep.subr.mxu0 0.0
  %1772 = vmatpush1.msra.mxu0 0.0
  %1773 = vmatprep.subr.mxu0 0.0
  %1774 = vmatpush1.msra.mxu0 0.0
  %1775 = vmatprep.subr.mxu0 0.0
  %1776 = vmatpush1.msra.mxu0 0.0
  %1777 = vmatprep.subr.mxu0 0.0
  %1778 = vmatpush1.msra.mxu0 0.0
  %1779 = vmatprep.subr.mxu0 0.0
  %1780 = vmatpush1.msra.mxu0 0.0
  %1781 = vmatprep.subr.mxu0 0.0
  %1782 = vmatpush1.msra.mxu0 0.0
  %1783 = vmatprep.subr.mxu0 0.0
  %1784 = vmatpush1.msra.mxu0 0.0
  %1785 = vmatprep.subr.mxu0 0.0
  %1786 = vmatpush1.msra.mxu0 0.0
  %1787 = vmatprep.subr.mxu0 0.0
  %1788 = vmatpush1.msra.mxu0 0.0
  %1789 = vmatprep.subr.mxu0 0.0
  %1790 = vmatpush1.msra.mxu0 0.0
  %1791 = vmatprep.subr.mxu0 0.0
  %1792 = vmatpush1.msra.mxu0 0.0
  %1793 = vmatprep.subr.mxu0 0.0
  %1794 = vmatpush1.msra.mxu0 0.0
  %1795 = vmatprep.subr.mxu0 0.0
  %1796 = vmatpush1.msra.mxu0 0.0
  %1797 = vmatprep.subr.mxu0 0.0
  %1798 = vmatpush1.msra.mxu0 0.0
  %1799 = vmatprep.subr.mxu0 0.0
  %1800 = vmatpush1.msra.mxu0 0.0
  %1801 = vmatprep.subr.mxu0 0.0
  %1802 = vmatpush1.msra.mxu0 0.0
  %1803 = vmatprep.subr.mxu0 0.0
  %1804 = vmatpush1.msra.mxu0 0.0
  %1805 = vmatprep.mubr.f32.mxu0 0.0
  %1806 = vmatmul.mubr.f32.gmra.mrb[0].mxu0 %v1668
  %v1807 = vpop.f32.mrb[0].mxu0
  %v1808 = vadd.f32 0.0, %v1807
  %v1809 = vpop.f32.mrb[0].mxu0
  %v1810 = vadd.f32 0.0, %v1809
  %1811 = vdwg.mxu0
  %1812 = vmatprep.subr.mxu0 %v1661
  %1813 = vmatpush1.msra.mxu0 %v1660
  %1814 = vmatprep.subr.mxu0 0.0
  %1815 = vmatpush1.msra.mxu0 0.0
  %1816 = vmatprep.subr.mxu0 0.0
  %1817 = vmatpush1.msra.mxu0 0.0
  %1818 = vmatprep.subr.mxu0 0.0
  %1819 = vmatpush1.msra.mxu0 0.0
  %1820 = vmatprep.subr.mxu0 0.0
  %1821 = vmatpush1.msra.mxu0 0.0
  %1822 = vmatprep.subr.mxu0 0.0
  %1823 = vmatpush1.msra.mxu0 0.0
  %1824 = vmatprep.subr.mxu0 0.0
  %1825 = vmatpush1.msra.mxu0 0.0
  %1826 = vmatprep.subr.mxu0 0.0
  %1827 = vmatpush1.msra.mxu0 0.0
  %1828 = vmatprep.subr.mxu0 0.0
  %1829 = vmatpush1.msra.mxu0 0.0
  %1830 = vmatprep.subr.mxu0 0.0
  %1831 = vmatpush1.msra.mxu0 0.0
  %1832 = vmatprep.subr.mxu0 0.0
  %1833 = vmatpush1.msra.mxu0 0.0
  %1834 = vmatprep.subr.mxu0 0.0
  %1835 = vmatpush1.msra.mxu0 0.0
  %1836 = vmatprep.subr.mxu0 0.0
  %1837 = vmatpush1.msra.mxu0 0.0
  %1838 = vmatprep.subr.mxu0 0.0
  %1839 = vmatpush1.msra.mxu0 0.0
  %1840 = vmatprep.subr.mxu0 0.0
  %1841 = vmatpush1.msra.mxu0 0.0
  %1842 = vmatprep.subr.mxu0 0.0
  %1843 = vmatpush1.msra.mxu0 0.0
  %1844 = vmatprep.subr.mxu0 0.0
  %1845 = vmatpush1.msra.mxu0 0.0
  %1846 = vmatprep.subr.mxu0 0.0
  %1847 = vmatpush1.msra.mxu0 0.0
  %1848 = vmatprep.subr.mxu0 0.0
  %1849 = vmatpush1.msra.mxu0 0.0
  %1850 = vmatprep.subr.mxu0 0.0
  %1851 = vmatpush1.msra.mxu0 0.0
  %1852 = vmatprep.subr.mxu0 0.0
  %1853 = vmatpush1.msra.mxu0 0.0
  %1854 = vmatprep.subr.mxu0 0.0
  %1855 = vmatpush1.msra.mxu0 0.0
  %1856 = vmatprep.subr.mxu0 0.0
  %1857 = vmatpush1.msra.mxu0 0.0
  %1858 = vmatprep.subr.mxu0 0.0
  %1859 = vmatpush1.msra.mxu0 0.0
  %1860 = vmatprep.subr.mxu0 0.0
  %1861 = vmatpush1.msra.mxu0 0.0
  %1862 = vmatprep.subr.mxu0 0.0
  %1863 = vmatpush1.msra.mxu0 0.0
  %1864 = vmatprep.subr.mxu0 0.0
  %1865 = vmatpush1.msra.mxu0 0.0
  %1866 = vmatprep.subr.mxu0 0.0
  %1867 = vmatpush1.msra.mxu0 0.0
  %1868 = vmatprep.subr.mxu0 0.0
  %1869 = vmatpush1.msra.mxu0 0.0
  %1870 = vmatprep.subr.mxu0 0.0
  %1871 = vmatpush1.msra.mxu0 0.0
  %1872 = vmatprep.subr.mxu0 0.0
  %1873 = vmatpush1.msra.mxu0 0.0
  %1874 = vmatprep.subr.mxu0 0.0
  %1875 = vmatpush1.msra.mxu0 0.0
  %1876 = vmatprep.mubr.f32.mxu0 0.0
  %1877 = vmatmul.mubr.f32.gmra.mrb[0].mxu0 %v1668
  %v1878 = vpop.f32.mrb[0].mxu0
  %v1879 = vadd.f32 0.0, %v1878
  %v1880 = vpop.f32.mrb[0].mxu0
  %v1881 = vadd.f32 0.0, %v1880
  %1882 = vdwg.mxu0
  %v1883 = vadd.f32 %v1619, %v1737
  %v1884 = vadd.f32 %v1620, %v1739
  %v1885 = vadd.f32 %v1621, %v1808
  %v1886 = vadd.f32 %v1622, %v1810
  %v1887 = vadd.f32 %v1623, %v1879
  %v1888 = vadd.f32 %v1624, %v1881
  %1889 = vrot.lane.b32.xlu0 %v397, 44
  %v1890 = vpop.permute.xlu0 %1889
  %1891 = vrot.lane.b32.xlu0 %v1625, 111
  %v1892 = vpop.permute.xlu0 %1891
  %1893 = vrot.lane.b32.xlu0 %v1626, 111
  %v1894 = vpop.permute.xlu0 %1893
  %1895 = vrot.lane.b32.xlu0 %v1627, 111
  %v1896 = vpop.permute.xlu0 %1895
  %1897 = vrot.lane.b32.xlu0 %v1628, 111
  %v1898 = vpop.permute.xlu0 %1897
  %1899 = vrot.lane.b32.xlu0 %v1629, 111
  %v1900 = vpop.permute.xlu0 %1899
  %1901 = vrot.lane.b32.xlu0 %v1630, 111
  %v1902 = vpop.permute.xlu0 %1901
  %1903 = vrot.lane.b32.xlu0 %v1631, 111
  %v1904 = vpop.permute.xlu0 %1903
  %vm1905 = vcmask 908288
  %v1906 = vsel %vm1905, %v1892, %v1894
  %v1907 = vsel %vm1905, %v1894, %v1896
  %v1908 = vsel %vm1905, %v1896, %v1898
  %v1909 = vsel %vm1905, %v1898, %v1900
  %v1910 = vsel %vm1905, %v1900, %v1902
  %v1911 = vsel %vm1905, %v1902, %v1904
  %v1918 = vsel %vm442, %v1890, 0
  %1920 = vmatprep.subr.mxu0 %v1907
  %1921 = vmatpush1.msra.mxu0 %v1906
  %1922 = vmatprep.subr.mxu0 0.0
  %1923 = vmatpush1.msra.mxu0 0.0
  %1924 = vmatprep.subr.mxu0 0.0
  %1925 = vmatpush1.msra.mxu0 0.0
  %1926 = vmatprep.subr.mxu0 0.0
  %1927 = vmatpush1.msra.mxu0 0.0
  %1928 = vmatprep.subr.mxu0 0.0
  %1929 = vmatpush1.msra.mxu0 0.0
  %1930 = vmatprep.subr.mxu0 0.0
  %1931 = vmatpush1.msra.mxu0 0.0
  %1932 = vmatprep.subr.mxu0 0.0
  %1933 = vmatpush1.msra.mxu0 0.0
  %1934 = vmatprep.subr.mxu0 0.0
  %1935 = vmatpush1.msra.mxu0 0.0
  %1936 = vmatprep.subr.mxu0 0.0
  %1937 = vmatpush1.msra.mxu0 0.0
  %1938 = vmatprep.subr.mxu0 0.0
  %1939 = vmatpush1.msra.mxu0 0.0
  %1940 = vmatprep.subr.mxu0 0.0
  %1941 = vmatpush1.msra.mxu0 0.0
  %1942 = vmatprep.subr.mxu0 0.0
  %1943 = vmatpush1.msra.mxu0 0.0
  %1944 = vmatprep.subr.mxu0 0.0
  %1945 = vmatpush1.msra.mxu0 0.0
  %1946 = vmatprep.subr.mxu0 0.0
  %1947 = vmatpush1.msra.mxu0 0.0
  %1948 = vmatprep.subr.mxu0 0.0
  %1949 = vmatpush1.msra.mxu0 0.0
  %1950 = vmatprep.subr.mxu0 0.0
  %1951 = vmatpush1.msra.mxu0 0.0
  %1952 = vmatprep.subr.mxu0 0.0
  %1953 = vmatpush1.msra.mxu0 0.0
  %1954 = vmatprep.subr.mxu0 0.0
  %1955 = vmatpush1.msra.mxu0 0.0
  %1956 = vmatprep.subr.mxu0 0.0
  %1957 = vmatpush1.msra.mxu0 0.0
  %1958 = vmatprep.subr.mxu0 0.0
  %1959 = vmatpush1.msra.mxu0 0.0
  %1960 = vmatprep.subr.mxu0 0.0
  %1961 = vmatpush1.msra.mxu0 0.0
  %1962 = vmatprep.subr.mxu0 0.0
  %1963 = vmatpush1.msra.mxu0 0.0
  %1964 = vmatprep.subr.mxu0 0.0
  %1965 = vmatpush1.msra.mxu0 0.0
  %1966 = vmatprep.subr.mxu0 0.0
  %1967 = vmatpush1.msra.mxu0 0.0
  %1968 = vmatprep.subr.mxu0 0.0
  %1969 = vmatpush1.msra.mxu0 0.0
  %1970 = vmatprep.subr.mxu0 0.0
  %1971 = vmatpush1.msra.mxu0 0.0
  %1972 = vmatprep.subr.mxu0 0.0
  %1973 = vmatpush1.msra.mxu0 0.0
  %1974 = vmatprep.subr.mxu0 0.0
  %1975 = vmatpush1.msra.mxu0 0.0
  %1976 = vmatprep.subr.mxu0 0.0
  %1977 = vmatpush1.msra.mxu0 0.0
  %1978 = vmatprep.subr.mxu0 0.0
  %1979 = vmatpush1.msra.mxu0 0.0
  %1980 = vmatprep.subr.mxu0 0.0
  %1981 = vmatpush1.msra.mxu0 0.0
  %1982 = vmatprep.subr.mxu0 0.0
  %1983 = vmatpush1.msra.mxu0 0.0
  %1984 = vmatprep.mubr.f32.mxu0 0.0
  %1985 = vmatmul.mubr.f32.gmra.mrb[0].mxu0 %v1918
  %v1986 = vpop.f32.mrb[0].mxu0
  %v1987 = vadd.f32 0.0, %v1986
  %v1988 = vpop.f32.mrb[0].mxu0
  %v1989 = vadd.f32 0.0, %v1988
  %1990 = vdwg.mxu0
  %1991 = vmatprep.subr.mxu0 %v1909
  %1992 = vmatpush1.msra.mxu0 %v1908
  %1993 = vmatprep.subr.mxu0 0.0
  %1994 = vmatpush1.msra.mxu0 0.0
  %1995 = vmatprep.subr.mxu0 0.0
  %1996 = vmatpush1.msra.mxu0 0.0
  %1997 = vmatprep.subr.mxu0 0.0
  %1998 = vmatpush1.msra.mxu0 0.0
  %1999 = vmatprep.subr.mxu0 0.0
  %2000 = vmatpush1.msra.mxu0 0.0
  %2001 = vmatprep.subr.mxu0 0.0
  %2002 = vmatpush1.msra.mxu0 0.0
  %2003 = vmatprep.subr.mxu0 0.0
  %2004 = vmatpush1.msra.mxu0 0.0
  %2005 = vmatprep.subr.mxu0 0.0
  %2006 = vmatpush1.msra.mxu0 0.0
  %2007 = vmatprep.subr.mxu0 0.0
  %2008 = vmatpush1.msra.mxu0 0.0
  %2009 = vmatprep.subr.mxu0 0.0
  %2010 = vmatpush1.msra.mxu0 0.0
  %2011 = vmatprep.subr.mxu0 0.0
  %2012 = vmatpush1.msra.mxu0 0.0
  %2013 = vmatprep.subr.mxu0 0.0
  %2014 = vmatpush1.msra.mxu0 0.0
  %2015 = vmatprep.subr.mxu0 0.0
  %2016 = vmatpush1.msra.mxu0 0.0
  %2017 = vmatprep.subr.mxu0 0.0
  %2018 = vmatpush1.msra.mxu0 0.0
  %2019 = vmatprep.subr.mxu0 0.0
  %2020 = vmatpush1.msra.mxu0 0.0
  %2021 = vmatprep.subr.mxu0 0.0
  %2022 = vmatpush1.msra.mxu0 0.0
  %2023 = vmatprep.subr.mxu0 0.0
  %2024 = vmatpush1.msra.mxu0 0.0
  %2025 = vmatprep.subr.mxu0 0.0
  %2026 = vmatpush1.msra.mxu0 0.0
  %2027 = vmatprep.subr.mxu0 0.0
  %2028 = vmatpush1.msra.mxu0 0.0
  %2029 = vmatprep.subr.mxu0 0.0
  %2030 = vmatpush1.msra.mxu0 0.0
  %2031 = vmatprep.subr.mxu0 0.0
  %2032 = vmatpush1.msra.mxu0 0.0
  %2033 = vmatprep.subr.mxu0 0.0
  %2034 = vmatpush1.msra.mxu0 0.0
  %2035 = vmatprep.subr.mxu0 0.0
  %2036 = vmatpush1.msra.mxu0 0.0
  %2037 = vmatprep.subr.mxu0 0.0
  %2038 = vmatpush1.msra.mxu0 0.0
  %2039 = vmatprep.subr.mxu0 0.0
  %2040 = vmatpush1.msra.mxu0 0.0
  %2041 = vmatprep.subr.mxu0 0.0
  %2042 = vmatpush1.msra.mxu0 0.0
  %2043 = vmatprep.subr.mxu0 0.0
  %2044 = vmatpush1.msra.mxu0 0.0
  %2045 = vmatprep.subr.mxu0 0.0
  %2046 = vmatpush1.msra.mxu0 0.0
  %2047 = vmatprep.subr.mxu0 0.0
  %2048 = vmatpush1.msra.mxu0 0.0
  %2049 = vmatprep.subr.mxu0 0.0
  %2050 = vmatpush1.msra.mxu0 0.0
  %2051 = vmatprep.subr.mxu0 0.0
  %2052 = vmatpush1.msra.mxu0 0.0
  %2053 = vmatprep.subr.mxu0 0.0
  %2054 = vmatpush1.msra.mxu0 0.0
  %2055 = vmatprep.mubr.f32.mxu0 0.0
  %2056 = vmatmul.mubr.f32.gmra.mrb[0].mxu0 %v1918
  %v2057 = vpop.f32.mrb[0].mxu0
  %v2058 = vadd.f32 0.0, %v2057
  %v2059 = vpop.f32.mrb[0].mxu0
  %v2060 = vadd.f32 0.0, %v2059
  %2061 = vdwg.mxu0
  %2062 = vmatprep.subr.mxu0 %v1911
  %2063 = vmatpush1.msra.mxu0 %v1910
  %2064 = vmatprep.subr.mxu0 0.0
  %2065 = vmatpush1.msra.mxu0 0.0
  %2066 = vmatprep.subr.mxu0 0.0
  %2067 = vmatpush1.msra.mxu0 0.0
  %2068 = vmatprep.subr.mxu0 0.0
  %2069 = vmatpush1.msra.mxu0 0.0
  %2070 = vmatprep.subr.mxu0 0.0
  %2071 = vmatpush1.msra.mxu0 0.0
  %2072 = vmatprep.subr.mxu0 0.0
  %2073 = vmatpush1.msra.mxu0 0.0
  %2074 = vmatprep.subr.mxu0 0.0
  %2075 = vmatpush1.msra.mxu0 0.0
  %2076 = vmatprep.subr.mxu0 0.0
  %2077 = vmatpush1.msra.mxu0 0.0
  %2078 = vmatprep.subr.mxu0 0.0
  %2079 = vmatpush1.msra.mxu0 0.0
  %2080 = vmatprep.subr.mxu0 0.0
  %2081 = vmatpush1.msra.mxu0 0.0
  %2082 = vmatprep.subr.mxu0 0.0
  %2083 = vmatpush1.msra.mxu0 0.0
  %2084 = vmatprep.subr.mxu0 0.0
  %2085 = vmatpush1.msra.mxu0 0.0
  %2086 = vmatprep.subr.mxu0 0.0
  %2087 = vmatpush1.msra.mxu0 0.0
  %2088 = vmatprep.subr.mxu0 0.0
  %2089 = vmatpush1.msra.mxu0 0.0
  %2090 = vmatprep.subr.mxu0 0.0
  %2091 = vmatpush1.msra.mxu0 0.0
  %2092 = vmatprep.subr.mxu0 0.0
  %2093 = vmatpush1.msra.mxu0 0.0
  %2094 = vmatprep.subr.mxu0 0.0
  %2095 = vmatpush1.msra.mxu0 0.0
  %2096 = vmatprep.subr.mxu0 0.0
  %2097 = vmatpush1.msra.mxu0 0.0
  %2098 = vmatprep.subr.mxu0 0.0
  %2099 = vmatpush1.msra.mxu0 0.0
  %2100 = vmatprep.subr.mxu0 0.0
  %2101 = vmatpush1.msra.mxu0 0.0
  %2102 = vmatprep.subr.mxu0 0.0
  %2103 = vmatpush1.msra.mxu0 0.0
  %2104 = vmatprep.subr.mxu0 0.0
  %2105 = vmatpush1.msra.mxu0 0.0
  %2106 = vmatprep.subr.mxu0 0.0
  %2107 = vmatpush1.msra.mxu0 0.0
  %2108 = vmatprep.subr.mxu0 0.0
  %2109 = vmatpush1.msra.mxu0 0.0
  %2110 = vmatprep.subr.mxu0 0.0
  %2111 = vmatpush1.msra.mxu0 0.0
  %2112 = vmatprep.subr.mxu0 0.0
  %2113 = vmatpush1.msra.mxu0 0.0
  %2114 = vmatprep.subr.mxu0 0.0
  %2115 = vmatpush1.msra.mxu0 0.0
  %2116 = vmatprep.subr.mxu0 0.0
  %2117 = vmatpush1.msra.mxu0 0.0
  %2118 = vmatprep.subr.mxu0 0.0
  %2119 = vmatpush1.msra.mxu0 0.0
  %2120 = vmatprep.subr.mxu0 0.0
  %2121 = vmatpush1.msra.mxu0 0.0
  %2122 = vmatprep.subr.mxu0 0.0
  %2123 = vmatpush1.msra.mxu0 0.0
  %2124 = vmatprep.subr.mxu0 0.0
  %2125 = vmatpush1.msra.mxu0 0.0
  %2126 = vmatprep.mubr.f32.mxu0 0.0
  %2127 = vmatmul.mubr.f32.gmra.mrb[0].mxu0 %v1918
  %v2128 = vpop.f32.mrb[0].mxu0
  %v2129 = vadd.f32 0.0, %v2128
  %v2130 = vpop.f32.mrb[0].mxu0
  %v2131 = vadd.f32 0.0, %v2130
  %2132 = vdwg.mxu0
  %v2133 = vadd.f32 %v1883, %v1987
  %v2134 = vadd.f32 %v1884, %v1989
  %v2135 = vadd.f32 %v1885, %v2058
  %v2136 = vadd.f32 %v1886, %v2060
  %v2137 = vadd.f32 %v1887, %v2129
  %v2138 = vadd.f32 %v1888, %v2131
  %2139 = vrot.lane.b32.xlu0 %v397, 36
  %v2140 = vpop.permute.xlu0 %2139
  %2141 = vrot.lane.b32.xlu0 %v1625, 110
  %v2142 = vpop.permute.xlu0 %2141
  %2143 = vrot.lane.b32.xlu0 %v1626, 110
  %v2144 = vpop.permute.xlu0 %2143
  %2145 = vrot.lane.b32.xlu0 %v1627, 110
  %v2146 = vpop.permute.xlu0 %2145
  %2147 = vrot.lane.b32.xlu0 %v1628, 110
  %v2148 = vpop.permute.xlu0 %2147
  %2149 = vrot.lane.b32.xlu0 %v1629, 110
  %v2150 = vpop.permute.xlu0 %2149
  %2151 = vrot.lane.b32.xlu0 %v1630, 110
  %v2152 = vpop.permute.xlu0 %2151
  %2153 = vrot.lane.b32.xlu0 %v1631, 110
  %v2154 = vpop.permute.xlu0 %2153
  %vm2155 = vcmask 900096
  %v2156 = vsel %vm2155, %v2142, %v2144
  %v2157 = vsel %vm2155, %v2144, %v2146
  %v2158 = vsel %vm2155, %v2146, %v2148
  %v2159 = vsel %vm2155, %v2148, %v2150
  %v2160 = vsel %vm2155, %v2150, %v2152
  %v2161 = vsel %vm2155, %v2152, %v2154
  %v2168 = vsel %vm442, %v2140, 0
  %2170 = vmatprep.subr.mxu0 %v2157
  %2171 = vmatpush1.msra.mxu0 %v2156
  %2172 = vmatprep.subr.mxu0 0.0
  %2173 = vmatpush1.msra.mxu0 0.0
  %2174 = vmatprep.subr.mxu0 0.0
  %2175 = vmatpush1.msra.mxu0 0.0
  %2176 = vmatprep.subr.mxu0 0.0
  %2177 = vmatpush1.msra.mxu0 0.0
  %2178 = vmatprep.subr.mxu0 0.0
  %2179 = vmatpush1.msra.mxu0 0.0
  %2180 = vmatprep.subr.mxu0 0.0
  %2181 = vmatpush1.msra.mxu0 0.0
  %2182 = vmatprep.subr.mxu0 0.0
  %2183 = vmatpush1.msra.mxu0 0.0
  %2184 = vmatprep.subr.mxu0 0.0
  %2185 = vmatpush1.msra.mxu0 0.0
  %2186 = vmatprep.subr.mxu0 0.0
  %2187 = vmatpush1.msra.mxu0 0.0
  %2188 = vmatprep.subr.mxu0 0.0
  %2189 = vmatpush1.msra.mxu0 0.0
  %2190 = vmatprep.subr.mxu0 0.0
  %2191 = vmatpush1.msra.mxu0 0.0
  %2192 = vmatprep.subr.mxu0 0.0
  %2193 = vmatpush1.msra.mxu0 0.0
  %2194 = vmatprep.subr.mxu0 0.0
  %2195 = vmatpush1.msra.mxu0 0.0
  %2196 = vmatprep.subr.mxu0 0.0
  %2197 = vmatpush1.msra.mxu0 0.0
  %2198 = vmatprep.subr.mxu0 0.0
  %2199 = vmatpush1.msra.mxu0 0.0
  %2200 = vmatprep.subr.mxu0 0.0
  %2201 = vmatpush1.msra.mxu0 0.0
  %2202 = vmatprep.subr.mxu0 0.0
  %2203 = vmatpush1.msra.mxu0 0.0
  %2204 = vmatprep.subr.mxu0 0.0
  %2205 = vmatpush1.msra.mxu0 0.0
  %2206 = vmatprep.subr.mxu0 0.0
  %2207 = vmatpush1.msra.mxu0 0.0
  %2208 = vmatprep.subr.mxu0 0.0
  %2209 = vmatpush1.msra.mxu0 0.0
  %2210 = vmatprep.subr.mxu0 0.0
  %2211 = vmatpush1.msra.mxu0 0.0
  %2212 = vmatprep.subr.mxu0 0.0
  %2213 = vmatpush1.msra.mxu0 0.0
  %2214 = vmatprep.subr.mxu0 0.0
  %2215 = vmatpush1.msra.mxu0 0.0
  %2216 = vmatprep.subr.mxu0 0.0
  %2217 = vmatpush1.msra.mxu0 0.0
  %2218 = vmatprep.subr.mxu0 0.0
  %2219 = vmatpush1.msra.mxu0 0.0
  %2220 = vmatprep.subr.mxu0 0.0
  %2221 = vmatpush1.msra.mxu0 0.0
  %2222 = vmatprep.subr.mxu0 0.0
  %2223 = vmatpush1.msra.mxu0 0.0
  %2224 = vmatprep.subr.mxu0 0.0
  %2225 = vmatpush1.msra.mxu0 0.0
  %2226 = vmatprep.subr.mxu0 0.0
  %2227 = vmatpush1.msra.mxu0 0.0
  %2228 = vmatprep.subr.mxu0 0.0
  %2229 = vmatpush1.msra.mxu0 0.0
  %2230 = vmatprep.subr.mxu0 0.0
  %2231 = vmatpush1.msra.mxu0 0.0
  %2232 = vmatprep.subr.mxu0 0.0
  %2233 = vmatpush1.msra.mxu0 0.0
  %2234 = vmatprep.mubr.f32.mxu0 0.0
  %2235 = vmatmul.mubr.f32.gmra.mrb[0].mxu0 %v2168
  %v2236 = vpop.f32.mrb[0].mxu0
  %v2237 = vadd.f32 0.0, %v2236
  %v2238 = vpop.f32.mrb[0].mxu0
  %v2239 = vadd.f32 0.0, %v2238
  %2240 = vdwg.mxu0
  %2241 = vmatprep.subr.mxu0 %v2159
  %2242 = vmatpush1.msra.mxu0 %v2158
  %2243 = vmatprep.subr.mxu0 0.0
  %2244 = vmatpush1.msra.mxu0 0.0
  %2245 = vmatprep.subr.mxu0 0.0
  %2246 = vmatpush1.msra.mxu0 0.0
  %2247 = vmatprep.subr.mxu0 0.0
  %2248 = vmatpush1.msra.mxu0 0.0
  %2249 = vmatprep.subr.mxu0 0.0
  %2250 = vmatpush1.msra.mxu0 0.0
  %2251 = vmatprep.subr.mxu0 0.0
  %2252 = vmatpush1.msra.mxu0 0.0
  %2253 = vmatprep.subr.mxu0 0.0
  %2254 = vmatpush1.msra.mxu0 0.0
  %2255 = vmatprep.subr.mxu0 0.0
  %2256 = vmatpush1.msra.mxu0 0.0
  %2257 = vmatprep.subr.mxu0 0.0
  %2258 = vmatpush1.msra.mxu0 0.0
  %2259 = vmatprep.subr.mxu0 0.0
  %2260 = vmatpush1.msra.mxu0 0.0
  %2261 = vmatprep.subr.mxu0 0.0
  %2262 = vmatpush1.msra.mxu0 0.0
  %2263 = vmatprep.subr.mxu0 0.0
  %2264 = vmatpush1.msra.mxu0 0.0
  %2265 = vmatprep.subr.mxu0 0.0
  %2266 = vmatpush1.msra.mxu0 0.0
  %2267 = vmatprep.subr.mxu0 0.0
  %2268 = vmatpush1.msra.mxu0 0.0
  %2269 = vmatprep.subr.mxu0 0.0
  %2270 = vmatpush1.msra.mxu0 0.0
  %2271 = vmatprep.subr.mxu0 0.0
  %2272 = vmatpush1.msra.mxu0 0.0
  %2273 = vmatprep.subr.mxu0 0.0
  %2274 = vmatpush1.msra.mxu0 0.0
  %2275 = vmatprep.subr.mxu0 0.0
  %2276 = vmatpush1.msra.mxu0 0.0
  %2277 = vmatprep.subr.mxu0 0.0
  %2278 = vmatpush1.msra.mxu0 0.0
  %2279 = vmatprep.subr.mxu0 0.0
  %2280 = vmatpush1.msra.mxu0 0.0
  %2281 = vmatprep.subr.mxu0 0.0
  %2282 = vmatpush1.msra.mxu0 0.0
  %2283 = vmatprep.subr.mxu0 0.0
  %2284 = vmatpush1.msra.mxu0 0.0
  %2285 = vmatprep.subr.mxu0 0.0
  %2286 = vmatpush1.msra.mxu0 0.0
  %2287 = vmatprep.subr.mxu0 0.0
  %2288 = vmatpush1.msra.mxu0 0.0
  %2289 = vmatprep.subr.mxu0 0.0
  %2290 = vmatpush1.msra.mxu0 0.0
  %2291 = vmatprep.subr.mxu0 0.0
  %2292 = vmatpush1.msra.mxu0 0.0
  %2293 = vmatprep.subr.mxu0 0.0
  %2294 = vmatpush1.msra.mxu0 0.0
  %2295 = vmatprep.subr.mxu0 0.0
  %2296 = vmatpush1.msra.mxu0 0.0
  %2297 = vmatprep.subr.mxu0 0.0
  %2298 = vmatpush1.msra.mxu0 0.0
  %2299 = vmatprep.subr.mxu0 0.0
  %2300 = vmatpush1.msra.mxu0 0.0
  %2301 = vmatprep.subr.mxu0 0.0
  %2302 = vmatpush1.msra.mxu0 0.0
  %2303 = vmatprep.subr.mxu0 0.0
  %2304 = vmatpush1.msra.mxu0 0.0
  %2305 = vmatprep.mubr.f32.mxu0 0.0
  %2306 = vmatmul.mubr.f32.gmra.mrb[0].mxu0 %v2168
  %v2307 = vpop.f32.mrb[0].mxu0
  %v2308 = vadd.f32 0.0, %v2307
  %v2309 = vpop.f32.mrb[0].mxu0
  %v2310 = vadd.f32 0.0, %v2309
  %2311 = vdwg.mxu0
  %2312 = vmatprep.subr.mxu0 %v2161
  %2313 = vmatpush1.msra.mxu0 %v2160
  %2314 = vmatprep.subr.mxu0 0.0
  %2315 = vmatpush1.msra.mxu0 0.0
  %2316 = vmatprep.subr.mxu0 0.0
  %2317 = vmatpush1.msra.mxu0 0.0
  %2318 = vmatprep.subr.mxu0 0.0
  %2319 = vmatpush1.msra.mxu0 0.0
  %2320 = vmatprep.subr.mxu0 0.0
  %2321 = vmatpush1.msra.mxu0 0.0
  %2322 = vmatprep.subr.mxu0 0.0
  %2323 = vmatpush1.msra.mxu0 0.0
  %2324 = vmatprep.subr.mxu0 0.0
  %2325 = vmatpush1.msra.mxu0 0.0
  %2326 = vmatprep.subr.mxu0 0.0
  %2327 = vmatpush1.msra.mxu0 0.0
  %2328 = vmatprep.subr.mxu0 0.0
  %2329 = vmatpush1.msra.mxu0 0.0
  %2330 = vmatprep.subr.mxu0 0.0
  %2331 = vmatpush1.msra.mxu0 0.0
  %2332 = vmatprep.subr.mxu0 0.0
  %2333 = vmatpush1.msra.mxu0 0.0
  %2334 = vmatprep.subr.mxu0 0.0
  %2335 = vmatpush1.msra.mxu0 0.0
  %2336 = vmatprep.subr.mxu0 0.0
  %2337 = vmatpush1.msra.mxu0 0.0
  %2338 = vmatprep.subr.mxu0 0.0
  %2339 = vmatpush1.msra.mxu0 0.0
  %2340 = vmatprep.subr.mxu0 0.0
  %2341 = vmatpush1.msra.mxu0 0.0
  %2342 = vmatprep.subr.mxu0 0.0
  %2343 = vmatpush1.msra.mxu0 0.0
  %2344 = vmatprep.subr.mxu0 0.0
  %2345 = vmatpush1.msra.mxu0 0.0
  %2346 = vmatprep.subr.mxu0 0.0
  %2347 = vmatpush1.msra.mxu0 0.0
  %2348 = vmatprep.subr.mxu0 0.0
  %2349 = vmatpush1.msra.mxu0 0.0
  %2350 = vmatprep.subr.mxu0 0.0
  %2351 = vmatpush1.msra.mxu0 0.0
  %2352 = vmatprep.subr.mxu0 0.0
  %2353 = vmatpush1.msra.mxu0 0.0
  %2354 = vmatprep.subr.mxu0 0.0
  %2355 = vmatpush1.msra.mxu0 0.0
  %2356 = vmatprep.subr.mxu0 0.0
  %2357 = vmatpush1.msra.mxu0 0.0
  %2358 = vmatprep.subr.mxu0 0.0
  %2359 = vmatpush1.msra.mxu0 0.0
  %2360 = vmatprep.subr.mxu0 0.0
  %2361 = vmatpush1.msra.mxu0 0.0
  %2362 = vmatprep.subr.mxu0 0.0
  %2363 = vmatpush1.msra.mxu0 0.0
  %2364 = vmatprep.subr.mxu0 0.0
  %2365 = vmatpush1.msra.mxu0 0.0
  %2366 = vmatprep.subr.mxu0 0.0
  %2367 = vmatpush1.msra.mxu0 0.0
  %2368 = vmatprep.subr.mxu0 0.0
  %2369 = vmatpush1.msra.mxu0 0.0
  %2370 = vmatprep.subr.mxu0 0.0
  %2371 = vmatpush1.msra.mxu0 0.0
  %2372 = vmatprep.subr.mxu0 0.0
  %2373 = vmatpush1.msra.mxu0 0.0
  %2374 = vmatprep.subr.mxu0 0.0
  %2375 = vmatpush1.msra.mxu0 0.0
  %2376 = vmatprep.mubr.f32.mxu0 0.0
  %2377 = vmatmul.mubr.f32.gmra.mrb[0].mxu0 %v2168
  %v2378 = vpop.f32.mrb[0].mxu0
  %v2379 = vadd.f32 0.0, %v2378
  %v2380 = vpop.f32.mrb[0].mxu0
  %v2381 = vadd.f32 0.0, %v2380
  %2382 = vdwg.mxu0
  %v2383 = vadd.f32 %v2133, %v2237
  %v2384 = vadd.f32 %v2134, %v2239
  %v2385 = vadd.f32 %v2135, %v2308
  %v2386 = vadd.f32 %v2136, %v2310
  %v2387 = vadd.f32 %v2137, %v2379
  %v2388 = vadd.f32 %v2138, %v2381
  %2389 = vrot.lane.b32.xlu0 %v397, 28
  %v2390 = vpop.permute.xlu0 %2389
  %2391 = vrot.lane.b32.xlu0 %v1625, 109
  %v2392 = vpop.permute.xlu0 %2391
  %2393 = vrot.lane.b32.xlu0 %v1626, 109
  %v2394 = vpop.permute.xlu0 %2393
  %2395 = vrot.lane.b32.xlu0 %v1627, 109
  %v2396 = vpop.permute.xlu0 %2395
  %2397 = vrot.lane.b32.xlu0 %v1628, 109
  %v2398 = vpop.permute.xlu0 %2397
  %2399 = vrot.lane.b32.xlu0 %v1629, 109
  %v2400 = vpop.permute.xlu0 %2399
  %2401 = vrot.lane.b32.xlu0 %v1630, 109
  %v2402 = vpop.permute.xlu0 %2401
  %2403 = vrot.lane.b32.xlu0 %v1631, 109
  %v2404 = vpop.permute.xlu0 %2403
  %vm2405 = vcmask 891904
  %v2406 = vsel %vm2405, %v2392, %v2394
  %v2407 = vsel %vm2405, %v2394, %v2396
  %v2408 = vsel %vm2405, %v2396, %v2398
  %v2409 = vsel %vm2405, %v2398, %v2400
  %v2410 = vsel %vm2405, %v2400, %v2402
  %v2411 = vsel %vm2405, %v2402, %v2404
  %v2418 = vsel %vm442, %v2390, 0
  %2420 = vmatprep.subr.mxu0 %v2407
  %2421 = vmatpush1.msra.mxu0 %v2406
  %2422 = vmatprep.subr.mxu0 0.0
  %2423 = vmatpush1.msra.mxu0 0.0
  %2424 = vmatprep.subr.mxu0 0.0
  %2425 = vmatpush1.msra.mxu0 0.0
  %2426 = vmatprep.subr.mxu0 0.0
  %2427 = vmatpush1.msra.mxu0 0.0
  %2428 = vmatprep.subr.mxu0 0.0
  %2429 = vmatpush1.msra.mxu0 0.0
  %2430 = vmatprep.subr.mxu0 0.0
  %2431 = vmatpush1.msra.mxu0 0.0
  %2432 = vmatprep.subr.mxu0 0.0
  %2433 = vmatpush1.msra.mxu0 0.0
  %2434 = vmatprep.subr.mxu0 0.0
  %2435 = vmatpush1.msra.mxu0 0.0
  %2436 = vmatprep.subr.mxu0 0.0
  %2437 = vmatpush1.msra.mxu0 0.0
  %2438 = vmatprep.subr.mxu0 0.0
  %2439 = vmatpush1.msra.mxu0 0.0
  %2440 = vmatprep.subr.mxu0 0.0
  %2441 = vmatpush1.msra.mxu0 0.0
  %2442 = vmatprep.subr.mxu0 0.0
  %2443 = vmatpush1.msra.mxu0 0.0
  %2444 = vmatprep.subr.mxu0 0.0
  %2445 = vmatpush1.msra.mxu0 0.0
  %2446 = vmatprep.subr.mxu0 0.0
  %2447 = vmatpush1.msra.mxu0 0.0
  %2448 = vmatprep.subr.mxu0 0.0
  %2449 = vmatpush1.msra.mxu0 0.0
  %2450 = vmatprep.subr.mxu0 0.0
  %2451 = vmatpush1.msra.mxu0 0.0
  %2452 = vmatprep.subr.mxu0 0.0
  %2453 = vmatpush1.msra.mxu0 0.0
  %2454 = vmatprep.subr.mxu0 0.0
  %2455 = vmatpush1.msra.mxu0 0.0
  %2456 = vmatprep.subr.mxu0 0.0
  %2457 = vmatpush1.msra.mxu0 0.0
  %2458 = vmatprep.subr.mxu0 0.0
  %2459 = vmatpush1.msra.mxu0 0.0
  %2460 = vmatprep.subr.mxu0 0.0
  %2461 = vmatpush1.msra.mxu0 0.0
  %2462 = vmatprep.subr.mxu0 0.0
  %2463 = vmatpush1.msra.mxu0 0.0
  %2464 = vmatprep.subr.mxu0 0.0
  %2465 = vmatpush1.msra.mxu0 0.0
  %2466 = vmatprep.subr.mxu0 0.0
  %2467 = vmatpush1.msra.mxu0 0.0
  %2468 = vmatprep.subr.mxu0 0.0
  %2469 = vmatpush1.msra.mxu0 0.0
  %2470 = vmatprep.subr.mxu0 0.0
  %2471 = vmatpush1.msra.mxu0 0.0
  %2472 = vmatprep.subr.mxu0 0.0
  %2473 = vmatpush1.msra.mxu0 0.0
  %2474 = vmatprep.subr.mxu0 0.0
  %2475 = vmatpush1.msra.mxu0 0.0
  %2476 = vmatprep.subr.mxu0 0.0
  %2477 = vmatpush1.msra.mxu0 0.0
  %2478 = vmatprep.subr.mxu0 0.0
  %2479 = vmatpush1.msra.mxu0 0.0
  %2480 = vmatprep.subr.mxu0 0.0
  %2481 = vmatpush1.msra.mxu0 0.0
  %2482 = vmatprep.subr.mxu0 0.0
  %2483 = vmatpush1.msra.mxu0 0.0
  %2484 = vmatprep.mubr.f32.mxu0 0.0
  %2485 = vmatmul.mubr.f32.gmra.mrb[0].mxu0 %v2418
  %v2486 = vpop.f32.mrb[0].mxu0
  %v2487 = vadd.f32 0.0, %v2486
  %v2488 = vpop.f32.mrb[0].mxu0
  %v2489 = vadd.f32 0.0, %v2488
  %2490 = vdwg.mxu0
  %2491 = vmatprep.subr.mxu0 %v2409
  %2492 = vmatpush1.msra.mxu0 %v2408
  %2493 = vmatprep.subr.mxu0 0.0
  %2494 = vmatpush1.msra.mxu0 0.0
  %2495 = vmatprep.subr.mxu0 0.0
  %2496 = vmatpush1.msra.mxu0 0.0
  %2497 = vmatprep.subr.mxu0 0.0
  %2498 = vmatpush1.msra.mxu0 0.0
  %2499 = vmatprep.subr.mxu0 0.0
  %2500 = vmatpush1.msra.mxu0 0.0
  %2501 = vmatprep.subr.mxu0 0.0
  %2502 = vmatpush1.msra.mxu0 0.0
  %2503 = vmatprep.subr.mxu0 0.0
  %2504 = vmatpush1.msra.mxu0 0.0
  %2505 = vmatprep.subr.mxu0 0.0
  %2506 = vmatpush1.msra.mxu0 0.0
  %2507 = vmatprep.subr.mxu0 0.0
  %2508 = vmatpush1.msra.mxu0 0.0
  %2509 = vmatprep.subr.mxu0 0.0
  %2510 = vmatpush1.msra.mxu0 0.0
  %2511 = vmatprep.subr.mxu0 0.0
  %2512 = vmatpush1.msra.mxu0 0.0
  %2513 = vmatprep.subr.mxu0 0.0
  %2514 = vmatpush1.msra.mxu0 0.0
  %2515 = vmatprep.subr.mxu0 0.0
  %2516 = vmatpush1.msra.mxu0 0.0
  %2517 = vmatprep.subr.mxu0 0.0
  %2518 = vmatpush1.msra.mxu0 0.0
  %2519 = vmatprep.subr.mxu0 0.0
  %2520 = vmatpush1.msra.mxu0 0.0
  %2521 = vmatprep.subr.mxu0 0.0
  %2522 = vmatpush1.msra.mxu0 0.0
  %2523 = vmatprep.subr.mxu0 0.0
  %2524 = vmatpush1.msra.mxu0 0.0
  %2525 = vmatprep.subr.mxu0 0.0
  %2526 = vmatpush1.msra.mxu0 0.0
  %2527 = vmatprep.subr.mxu0 0.0
  %2528 = vmatpush1.msra.mxu0 0.0
  %2529 = vmatprep.subr.mxu0 0.0
  %2530 = vmatpush1.msra.mxu0 0.0
  %2531 = vmatprep.subr.mxu0 0.0
  %2532 = vmatpush1.msra.mxu0 0.0
  %2533 = vmatprep.subr.mxu0 0.0
  %2534 = vmatpush1.msra.mxu0 0.0
  %2535 = vmatprep.subr.mxu0 0.0
  %2536 = vmatpush1.msra.mxu0 0.0
  %2537 = vmatprep.subr.mxu0 0.0
  %2538 = vmatpush1.msra.mxu0 0.0
  %2539 = vmatprep.subr.mxu0 0.0
  %2540 = vmatpush1.msra.mxu0 0.0
  %2541 = vmatprep.subr.mxu0 0.0
  %2542 = vmatpush1.msra.mxu0 0.0
  %2543 = vmatprep.subr.mxu0 0.0
  %2544 = vmatpush1.msra.mxu0 0.0
  %2545 = vmatprep.subr.mxu0 0.0
  %2546 = vmatpush1.msra.mxu0 0.0
  %2547 = vmatprep.subr.mxu0 0.0
  %2548 = vmatpush1.msra.mxu0 0.0
  %2549 = vmatprep.subr.mxu0 0.0
  %2550 = vmatpush1.msra.mxu0 0.0
  %2551 = vmatprep.subr.mxu0 0.0
  %2552 = vmatpush1.msra.mxu0 0.0
  %2553 = vmatprep.subr.mxu0 0.0
  %2554 = vmatpush1.msra.mxu0 0.0
  %2555 = vmatprep.mubr.f32.mxu0 0.0
  %2556 = vmatmul.mubr.f32.gmra.mrb[0].mxu0 %v2418
  %v2557 = vpop.f32.mrb[0].mxu0
  %v2558 = vadd.f32 0.0, %v2557
  %v2559 = vpop.f32.mrb[0].mxu0
  %v2560 = vadd.f32 0.0, %v2559
  %2561 = vdwg.mxu0
  %2562 = vmatprep.subr.mxu0 %v2411
  %2563 = vmatpush1.msra.mxu0 %v2410
  %2564 = vmatprep.subr.mxu0 0.0
  %2565 = vmatpush1.msra.mxu0 0.0
  %2566 = vmatprep.subr.mxu0 0.0
  %2567 = vmatpush1.msra.mxu0 0.0
  %2568 = vmatprep.subr.mxu0 0.0
  %2569 = vmatpush1.msra.mxu0 0.0
  %2570 = vmatprep.subr.mxu0 0.0
  %2571 = vmatpush1.msra.mxu0 0.0
  %2572 = vmatprep.subr.mxu0 0.0
  %2573 = vmatpush1.msra.mxu0 0.0
  %2574 = vmatprep.subr.mxu0 0.0
  %2575 = vmatpush1.msra.mxu0 0.0
  %2576 = vmatprep.subr.mxu0 0.0
  %2577 = vmatpush1.msra.mxu0 0.0
  %2578 = vmatprep.subr.mxu0 0.0
  %2579 = vmatpush1.msra.mxu0 0.0
  %2580 = vmatprep.subr.mxu0 0.0
  %2581 = vmatpush1.msra.mxu0 0.0
  %2582 = vmatprep.subr.mxu0 0.0
  %2583 = vmatpush1.msra.mxu0 0.0
  %2584 = vmatprep.subr.mxu0 0.0
  %2585 = vmatpush1.msra.mxu0 0.0
  %2586 = vmatprep.subr.mxu0 0.0
  %2587 = vmatpush1.msra.mxu0 0.0
  %2588 = vmatprep.subr.mxu0 0.0
  %2589 = vmatpush1.msra.mxu0 0.0
  %2590 = vmatprep.subr.mxu0 0.0
  %2591 = vmatpush1.msra.mxu0 0.0
  %2592 = vmatprep.subr.mxu0 0.0
  %2593 = vmatpush1.msra.mxu0 0.0
  %2594 = vmatprep.subr.mxu0 0.0
  %2595 = vmatpush1.msra.mxu0 0.0
  %2596 = vmatprep.subr.mxu0 0.0
  %2597 = vmatpush1.msra.mxu0 0.0
  %2598 = vmatprep.subr.mxu0 0.0
  %2599 = vmatpush1.msra.mxu0 0.0
  %2600 = vmatprep.subr.mxu0 0.0
  %2601 = vmatpush1.msra.mxu0 0.0
  %2602 = vmatprep.subr.mxu0 0.0
  %2603 = vmatpush1.msra.mxu0 0.0
  %2604 = vmatprep.subr.mxu0 0.0
  %2605 = vmatpush1.msra.mxu0 0.0
  %2606 = vmatprep.subr.mxu0 0.0
  %2607 = vmatpush1.msra.mxu0 0.0
  %2608 = vmatprep.subr.mxu0 0.0
  %2609 = vmatpush1.msra.mxu0 0.0
  %2610 = vmatprep.subr.mxu0 0.0
  %2611 = vmatpush1.msra.mxu0 0.0
  %2612 = vmatprep.subr.mxu0 0.0
  %2613 = vmatpush1.msra.mxu0 0.0
  %2614 = vmatprep.subr.mxu0 0.0
  %2615 = vmatpush1.msra.mxu0 0.0
  %2616 = vmatprep.subr.mxu0 0.0
  %2617 = vmatpush1.msra.mxu0 0.0
  %2618 = vmatprep.subr.mxu0 0.0
  %2619 = vmatpush1.msra.mxu0 0.0
  %2620 = vmatprep.subr.mxu0 0.0
  %2621 = vmatpush1.msra.mxu0 0.0
  %2622 = vmatprep.subr.mxu0 0.0
  %2623 = vmatpush1.msra.mxu0 0.0
  %2624 = vmatprep.subr.mxu0 0.0
  %2625 = vmatpush1.msra.mxu0 0.0
  %2626 = vmatprep.mubr.f32.mxu0 0.0
  %2627 = vmatmul.mubr.f32.gmra.mrb[0].mxu0 %v2418
  %v2628 = vpop.f32.mrb[0].mxu0
  %v2629 = vadd.f32 0.0, %v2628
  %v2630 = vpop.f32.mrb[0].mxu0
  %v2631 = vadd.f32 0.0, %v2630
  %2632 = vdwg.mxu0
  %v2633 = vadd.f32 %v2383, %v2487
  %v2634 = vadd.f32 %v2384, %v2489
  %v2635 = vadd.f32 %v2385, %v2558
  %v2636 = vadd.f32 %v2386, %v2560
  %v2637 = vadd.f32 %v2387, %v2629
  %v2638 = vadd.f32 %v2388, %v2631
  %v2639 = vmul.f32 %v2633, %v19
  %v2640 = vmul.f32 %v2634, %v23
  %v2641 = vmul.f32 %v2635, %v27
  %v2642 = vmul.f32 %v2636, %v31
  %v2643 = vmul.f32 %v2637, %v35
  %v2644 = vmul.f32 %v2638, %v39
  %v2645 = vadd.f32 %v2639, %v2640
  %v2646 = vadd.f32 %v2645, %v2641
  %v2647 = vadd.f32 %v2646, %v2642
  %v2648 = vadd.f32 %v2647, %v2643
  %v2649 = vadd.f32 %v2648, %v2644
  %2650 = vadd.xlane.f32.xlu0 %v2649
  %v2651 = vpop.xlane.xlu0 %2650
  %v2652 = vmul.f32 %v2651, 0.001953125
  %v2653 = vmul.f32 %v2639, %v2633
  %v2654 = vmul.f32 %v2640, %v2634
  %v2655 = vmul.f32 %v2641, %v2635
  %v2656 = vmul.f32 %v2642, %v2636
  %v2657 = vmul.f32 %v2643, %v2637
  %v2658 = vmul.f32 %v2644, %v2638
  %v2659 = vadd.f32 %v2653, %v2654
  %v2660 = vadd.f32 %v2659, %v2655
  %v2661 = vadd.f32 %v2660, %v2656
  %v2662 = vadd.f32 %v2661, %v2657
  %v2663 = vadd.f32 %v2662, %v2658
  %2664 = vadd.xlane.f32.xlu0 %v2663
  %v2665 = vpop.xlane.xlu0 %2664
  %v2666 = vmul.f32 %v2665, 0.001953125
  %v2667 = vmul.f32 %v2652, %v2652
  %v2668 = vsub.f32 %v2666, %v2667
  %v2669 = vsub.f32 %v2633, %v2652
  %v2670 = vsub.f32 %v2634, %v2652
  %v2671 = vsub.f32 %v2635, %v2652
  %v2672 = vsub.f32 %v2636, %v2652
  %v2673 = vsub.f32 %v2637, %v2652
  %v2674 = vsub.f32 %v2638, %v2652
  %v2675 = vadd.f32 %v2668, 1e-05
  %v2676 = vrsqrt.pop %v2675
  %v2677 = vmul.f32 %v2669, %v2676
  %v2678 = vmul.f32 %v2670, %v2676
  %v2679 = vmul.f32 %v2671, %v2676
  %v2680 = vmul.f32 %v2672, %v2676
  %v2681 = vmul.f32 %v2673, %v2676
  %v2682 = vmul.f32 %v2674, %v2676
  %2683 = vset.pattern.permute.xlu0 110
  %2684 = vperm.xlu0 %2683, %v46
  %v2685 = vpop.permute.xlu0 %2684
  %v2687 = vmul.f32 %v2677, %v2685
  %v2688 = vmul.f32 %v2678, %v2685
  %v2689 = vmul.f32 %v2679, %v2685
  %v2690 = vmul.f32 %v2680, %v2685
  %v2691 = vmul.f32 %v2681, %v2685
  %v2692 = vmul.f32 %v2682, %v2685
  %2693 = vset.pattern.permute.xlu0 111
  %2694 = vperm.xlu0 %2693, %v46
  %v2695 = vpop.permute.xlu0 %2694
  %v2697 = vadd.f32 %v2687, %v2695
  %v2698 = vadd.f32 %v2688, %v2695
  %v2699 = vadd.f32 %v2689, %v2695
  %v2700 = vadd.f32 %v2690, %v2695
  %v2701 = vadd.f32 %v2691, %v2695
  %v2702 = vadd.f32 %v2692, %v2695
  %v2703 = vmax.f32 %v2697, 0.0
  %v2704 = vmax.f32 %v2698, 0.0
  %v2705 = vmax.f32 %v2699, 0.0
  %v2706 = vmax.f32 %v2700, 0.0
  %v2707 = vmax.f32 %v2701, 0.0
  %v2708 = vmax.f32 %v2702, 0.0
  %2709 = vst [vmem:[%s3] sm:$0xff] %v2703
  %2710 = vst [vmem:[%s3 + $0x8] sm:$0xff] %v2704
  %2711 = vst [vmem:[%s3 + $0x10] sm:$0xff] %v2705
  %2712 = vst [vmem:[%s3 + $0x18] sm:$0xff] %v2706
  %2713 = vst [vmem:[%s3 + $0x20] sm:$0xff] %v2707
  %2714 = vst [vmem:[%s3 + $0x28] sm:$0xff] %v2708
  // Predicated region
  $region14: #{convb_forward.1} parent=0 // pred_check
    _
  $region15: #{convb_forward.1} parent=0 // pred_check_branch
    %2716 = sbr.rel (0) target = $region17
  $region16: #{convb_forward.1} parent=0 // pred_region
    _
  $region17: #{convb_forward.1} parent=0 // pred_fallthru
    _
  // Predicated region
  $region18: #{convb_forward.1} parent=0 // pred_check
    _
  $region19: #{convb_forward.1} parent=0 // pred_check_branch
    %2718 = sbr.rel (0) target = $region21
  $region20: #{convb_forward.1} parent=0 // pred_region
    _
  $region21: #{convb_forward.1} parent=0 // pred_fallthru
    _

</llo_original>
